<compile_context>
chip_gen: v7x
topology: tpu7x:2x2x1
jax: 0.10.0
libtpu: 0.0.40
codegen_flags: <defaults>
</compile_context>

<pallas_src>
import math
import functools

import jax
import jax.numpy as jnp
from jax.experimental import pallas as pl
from jax.experimental.pallas import tpu as pltpu

_LN_EPS = 1e-5


def _round_up(n, m):
    return ((n + m - 1) // m) * m


def _vmem_limit(block_bytes, extra_bytes=0):
    # 2x for double-buffered pipeline blocks + in-kernel temporaries + headroom;
    # floor at the 32 MiB scoped default, cap at v7x's 64 MiB physical VMEM so the
    # same setting is valid on v5e / v6e / v7x.
    return int(min(max(2 * block_bytes + extra_bytes + (4 << 20), 32 << 20), 64 << 20))


def _layernorm(z, g, beta, eps):
    mean = jnp.mean(z, axis=-1, keepdims=True)
    zc = z - mean
    var = jnp.mean(zc * zc, axis=-1, keepdims=True)
    return zc * jax.lax.rsqrt(var + eps) * g + beta


# ----------------------------- Pallas kernels ------------------------------

def _encoder_layer_kernel(x_ref, w_in_ref, b_in_ref, w_out_ref, b_out_ref,
                          g1_ref, beta1_ref, w1_ref, bb1_ref, w2_ref, bb2_ref,
                          g2_ref, beta2_ref, o_ref,
                          *, nhead, head_dim, d_model, eps):
    """One full post-norm TransformerEncoderLayer for one batch element:
    QKV proj -> batched-head softmax attention -> out proj -> residual+LN ->
    linear1+ReLU -> linear2 -> residual+LN.  x / o are bf16 (HBM traffic halved);
    all accumulation, softmax, residual and LayerNorm math is f32."""
    x = x_ref[0]                                   # [S, D] bf16
    x32 = x.astype(jnp.float32)

    # ---- attention: one wide QKV matmul (N = 3D keeps the MXU busy) ----
    qkv = jnp.dot(x, w_in_ref[...], preferred_element_type=jnp.float32) + b_in_ref[...]
    qkv = qkv.astype(jnp.bfloat16)                 # single downcast of the whole [S, 3D]
    q = qkv[:, :d_model]                           # D-aligned lane slices
    k = qkv[:, d_model:2 * d_model]
    v = qkv[:, 2 * d_model:]

    def to_heads(t):                               # [S, D] -> [H, S, hd] (head-major)
        return jnp.stack(
            [t[:, h * head_dim:(h + 1) * head_dim] for h in range(nhead)], axis=0)

    qh, kh, vh = to_heads(q), to_heads(k), to_heads(v)

    # Batched-head score / PV matmuls (leading batch dim).
    s = jnp.einsum('hqd,hkd->hqk', qh, kh,
                   preferred_element_type=jnp.float32) * (1.0 / math.sqrt(head_dim))
    m = jnp.max(s, axis=-1, keepdims=True)
    p = jnp.exp(s - m)
    denom = jnp.sum(p, axis=-1, keepdims=True)
    p = p * pl.reciprocal(denom, approx=True)      # EUP reciprocal, not a VPU divide
    ctx_heads = jnp.einsum('hqk,hkd->hqd', p.astype(jnp.bfloat16), vh,
                           preferred_element_type=jnp.float32)        # [H, S, hd]
    ctx = jnp.concatenate([ctx_heads[h] for h in range(nhead)], axis=-1)  # [S, D]

    # Single full-K output projection (K = D, not head_dim).
    attn = jnp.dot(ctx.astype(jnp.bfloat16), w_out_ref[...],
                   preferred_element_type=jnp.float32) + b_out_ref[...]
    z1 = _layernorm(x32 + attn, g1_ref[...], beta1_ref[...], eps)

    # ---- feed-forward ----
    hid = jnp.dot(z1.astype(jnp.bfloat16), w1_ref[...],
                  preferred_element_type=jnp.float32) + bb1_ref[...]
    hid = jnp.maximum(hid, 0.0)
    ff = jnp.dot(hid.astype(jnp.bfloat16), w2_ref[...],
                 preferred_element_type=jnp.float32) + bb2_ref[...]
    z2 = _layernorm(z1 + ff, g2_ref[...], beta2_ref[...], eps)

    o_ref[0] = z2.astype(o_ref.dtype)              # bf16 store (lane-dense D last)


def _tiled_matmul_bias_kernel(x_ref, w_ref, b_ref, o_ref, acc_ref):
    """out = x @ w + b on an (M, N, K) grid with an f32 VMEM accumulator.
    (With tk = K the K axis collapses to a single pass.)"""
    @pl.when(pl.program_id(2) == 0)
    def _init():
        acc_ref[...] = jnp.zeros_like(acc_ref)

    acc_ref[...] += jnp.dot(x_ref[...], w_ref[...], preferred_element_type=jnp.float32)

    @pl.when(pl.program_id(2) == pl.num_programs(2) - 1)
    def _finalize():
        o_ref[...] = acc_ref[...] + b_ref[...]


# ----------------------------- Pallas wrappers ------------------------------

def pallas_encoder_layer(x, layer, *, nhead):
    """x: [B, S, D] bf16 -> [B, S, D] bf16.  Whole layer (attn + FFN) fused."""
    B, S, D = x.shape
    Dh = layer["w1_t"].shape[1]
    hd = D // nhead
    kern = functools.partial(_encoder_layer_kernel, nhead=nhead, head_dim=hd,
                             d_model=D, eps=_LN_EPS)

    def rep(shape):
        return pl.BlockSpec(shape, lambda b: (0,) * len(shape))

    block_bytes = (2 * S * D * 2                               # x + out blocks (bf16)
                   + (D * 3 * D + D * D + 2 * D * Dh) * 2      # weights (bf16)
                   + (3 * D + 2 * D + Dh + 4 * D) * 4)         # biases / LN params
    temps_bytes = (nhead * S * S + S * Dh + 5 * S * D) * 4     # scores, hidden, f32 temps

    return pl.pallas_call(
        kern,
        out_shape=jax.ShapeDtypeStruct((B, S, D), jnp.bfloat16),
        grid=(B,),
        in_specs=[pl.BlockSpec((1, S, D), lambda b: (b, 0, 0)),
                  rep((D, 3 * D)), rep((1, 3 * D)),
                  rep((D, D)), rep((1, D)),
                  rep((1, D)), rep((1, D)),
                  rep((D, Dh)), rep((1, Dh)),
                  rep((Dh, D)), rep((1, D)),
                  rep((1, D)), rep((1, D))],
        out_specs=pl.BlockSpec((1, S, D), lambda b: (b, 0, 0)),
        compiler_params=pltpu.CompilerParams(
            dimension_semantics=("parallel",),
            vmem_limit_bytes=_vmem_limit(block_bytes, temps_bytes)),
    )(x, layer["w_in_t"], layer["b_in"], layer["w_out_t"], layer["b_out"],
      layer["ln1_g"], layer["ln1_b"],
      layer["w1_t"], layer["b1"], layer["w2_t"], layer["b2"],
      layer["ln2_g"], layer["ln2_b"])


def pallas_decoder_linear(x, w_t, b2d, *, tm=512, tn=512):
    """x [M, K] @ w_t [K, Np] + b [1, Np].  w_t / b2d are pre-padded at init
    (Np <= 512 or a multiple of 512), so only the small activation gets row-padded."""
    M, K = x.shape
    Np = w_t.shape[1]
    tn = min(tn, Np)                        # divides Np by the init-time padding contract
    tm = min(tm, _round_up(M, 8))
    Mp = _round_up(M, tm)

    xb = x.astype(jnp.bfloat16)
    if Mp != M:
        xb = jnp.pad(xb, ((0, Mp - M), (0, 0)))

    grid = (Mp // tm, Np // tn, 1)          # K collapsed: tk = K, no accumulator passes
    block_bytes = tm * K * 2 + K * tn * 2 + tn * 4 + 2 * tm * tn * 4

    out = pl.pallas_call(
        _tiled_matmul_bias_kernel,
        out_shape=jax.ShapeDtypeStruct((Mp, Np), jnp.float32),
        grid=grid,
        in_specs=[pl.BlockSpec((tm, K), lambda i, j, k: (i, 0)),
                  pl.BlockSpec((K, tn), lambda i, j, k: (0, j)),
                  pl.BlockSpec((1, tn), lambda i, j, k: (0, j))],
        out_specs=pl.BlockSpec((tm, tn), lambda i, j, k: (i, j)),
        scratch_shapes=[pltpu.VMEM((tm, tn), jnp.float32)],
        compiler_params=pltpu.CompilerParams(
            dimension_semantics=("parallel", "parallel", "arbitrary"),
            vmem_limit_bytes=_vmem_limit(block_bytes)),
        cost_estimate=pl.CostEstimate(
            flops=2 * Mp * Np * K, transcendentals=0,
            bytes_accessed=Mp * K * 2 + K * Np * 2 + Np * 4 + Mp * Np * 4),
    )(xb, w_t, b2d)
    return out[:M]


# ----------------------------- Model (glue + kernels) -----------------------

def make_positional_encoding(max_len, d_model):
    position = jnp.arange(max_len, dtype=jnp.float32)[:, None]
    div_term = jnp.exp(
        jnp.arange(0, d_model, 2, dtype=jnp.float32) * (-math.log(10000.0) / d_model))
    pe = jnp.zeros((max_len, d_model), dtype=jnp.float32)
    pe = pe.at[:, 0::2].set(jnp.sin(position * div_term))
    pe = pe.at[:, 1::2].set(jnp.cos(position * div_term))
    return pe                                              # [max_len, d_model]


def init_params(key, ntoken, d_model, nhead, d_hid, nlayers, max_len=5000):
    initrange = 0.1
    keys = jax.random.split(key, 2 + nlayers)
    emb = jax.random.uniform(keys[0], (ntoken, d_model), jnp.float32, -initrange, initrange)
    dec_w = jax.random.uniform(keys[1], (ntoken, d_model), jnp.float32, -initrange, initrange)

    def xavier(k, shape):
        fan_out, fan_in = shape
        bound = math.sqrt(6.0 / (fan_in + fan_out))
        return jax.random.uniform(k, shape, jnp.float32, -bound, bound)

    layers = []
    for l in range(nlayers):
        lk = jax.random.split(keys[2 + l], 4)
        w_in = xavier(lk[0], (3 * d_model, d_model))   # MHA in_proj_weight
        w_out = xavier(lk[1], (d_model, d_model))      # MHA out_proj.weight
        w1 = xavier(lk[2], (d_hid, d_model))           # linear1.weight
        w2 = xavier(lk[3], (d_model, d_hid))           # linear2.weight
        layers.append({
            # MXU operands stored pre-transposed ([in, out]) and in bf16.
            "w_in_t": w_in.T.astype(jnp.bfloat16),
            "b_in": jnp.zeros((1, 3 * d_model), jnp.float32),
            "w_out_t": w_out.T.astype(jnp.bfloat16),
            "b_out": jnp.zeros((1, d_model), jnp.float32),
            "w1_t": w1.T.astype(jnp.bfloat16),
            "b1": jnp.zeros((1, d_hid), jnp.float32),
            "w2_t": w2.T.astype(jnp.bfloat16),
            "b2": jnp.zeros((1, d_model), jnp.float32),
            "ln1_g": jnp.ones((1, d_model), jnp.float32),
            "ln1_b": jnp.zeros((1, d_model), jnp.float32),
            "ln2_g": jnp.ones((1, d_model), jnp.float32),
            "ln2_b": jnp.zeros((1, d_model), jnp.float32),
        })

    # Decoder (vocab) weight/bias padded ONCE here — never re-padded per forward.
    npad = _round_up(ntoken, 128) if ntoken <= 512 else _round_up(ntoken, 512)
    dec_w_t = jnp.zeros((d_model, npad), jnp.bfloat16).at[:, :ntoken].set(
        dec_w.T.astype(jnp.bfloat16))
    dec_b = jnp.zeros((1, npad), jnp.float32)

    return {
        "emb": emb,
        "pe": make_positional_encoding(max_len, d_model),
        "dec_w_t": dec_w_t,
        "dec_b": dec_b,
        "layers": layers,
    }


def my_model_forward(params, src, *, d_model, nhead):
    """src: [S, B] int32 -> logits [S, B, ntoken] (PyTorch post-norm encoder, eval)."""
    S, B = src.shape
    ntoken = params["emb"].shape[0]

    # Embedding gather + sqrt(d_model) scale + positional add stay in XLA glue
    # (fuses with the gather); inter-layer activations are carried as bf16.
    x = params["emb"][src.T] * math.sqrt(d_model) + params["pe"][:S][None, :, :]
    x = x.astype(jnp.bfloat16)                              # [B, S, D]

    for layer in params["layers"]:
        x = pallas_encoder_layer(x, layer, nhead=nhead)     # one fused call per layer

    logits = pallas_decoder_linear(x.reshape(B * S, d_model),
                                   params["dec_w_t"], params["dec_b"])   # [B*S, Np]
    logits = logits[:, :ntoken]
    return logits.reshape(B, S, ntoken).transpose(1, 0, 2)  # [S, B, ntoken]


# ----------------------------- demo ------------------------------

if __name__ == "__main__":
    # NOTE: for real workloads pick d_model / d_hid as multiples of 128 so all
    # last-dim loads/stores are full-lane; the demo mirrors the tiny spec shapes.
    ntoken, d_model, nhead, d_hid, nlayers = 16, 32, 4, 64, 2
    seq_len, batch = 8, 2

    key = jax.random.PRNGKey(0)
    pkey, dkey = jax.random.split(key)
    params = init_params(pkey, ntoken, d_model, nhead, d_hid, nlayers)
    src = jax.random.randint(dkey, (seq_len, batch), 0, ntoken, dtype=jnp.int32)

    fwd = jax.jit(functools.partial(my_model_forward, d_model=d_model, nhead=nhead))
    out = fwd(params, src)
    jax.block_until_ready(out)

    assert out.shape == (seq_len, batch, ntoken), out.shape
    assert bool(jnp.all(jnp.isfinite(out)))
    print("KERNEL_OK")
</pallas_src>

<mosaic_0001>
module attributes {stable_mosaic.version = 11 : i64} {
  func.func @_tiled_matmul_bias_kernel(%arg0: i32, %arg1: i32, %arg2: i32, %arg3: memref<16x32xbf16, #tpu.memory_space<vmem>>, %arg4: memref<32x128xbf16, #tpu.memory_space<vmem>>, %arg5: memref<1x128xf32, #tpu.memory_space<vmem>>, %arg6: memref<16x128xf32, #tpu.memory_space<vmem>>, %arg7: memref<16x128xf32, #tpu.memory_space<vmem>>) attributes {dimension_semantics = [#tpu.dimension_semantics<parallel>, #tpu.dimension_semantics<parallel>, #tpu.dimension_semantics<arbitrary>], iteration_bounds = array<i64: 1, 1, 1>, scalar_prefetch = 0 : i64, scratch_operands = 1 : i64, tpu.core_type = #tpu.core_type<tc>, window_params = [{transform_indices = @transform_0, window_bounds = array<i64: 16, 32>}, {transform_indices = @transform_1, window_bounds = array<i64: 32, 128>}, {transform_indices = @transform_2, window_bounds = array<i64: 1, 128>}, {transform_indices = @transform_3, window_bounds = array<i64: 16, 128>}]} {
    %c0_i32 = arith.constant 0 : i32
    %0 = arith.cmpi eq, %arg2, %c0_i32 : i32
    %1 = arith.extui %0 : i1 to i32
    %c0_i32_0 = arith.constant 0 : i32
    %2 = arith.cmpi ne, %1, %c0_i32_0 : i32
    scf.if %2 {
      %cst_10 = arith.constant 0.000000e+00 : f32
      %12 = vector.broadcast %cst_10 : f32 to vector<16x128xf32>
      %c0_11 = arith.constant 0 : index
      %c0_12 = arith.constant 0 : index
      %13 = vector.load %arg7[%c0_11, %c0_12] : memref<16x128xf32, #tpu.memory_space<vmem>>, vector<16x128xf32>
      tpu.vector_store %arg7[%c0_11, %c0_12], %12 {strides = array<i32>} : memref<16x128xf32, #tpu.memory_space<vmem>>, vector<16x128xf32>,
    } else {
    }
    %c0 = arith.constant 0 : index
    %c0_1 = arith.constant 0 : index
    %3 = vector.load %arg7[%c0, %c0_1] : memref<16x128xf32, #tpu.memory_space<vmem>>, vector<16x128xf32>
    %c0_2 = arith.constant 0 : index
    %c0_3 = arith.constant 0 : index
    %4 = vector.load %arg3[%c0_2, %c0_3] : memref<16x32xbf16, #tpu.memory_space<vmem>>, vector<16x32xbf16>
    %c0_4 = arith.constant 0 : index
    %c0_5 = arith.constant 0 : index
    %5 = vector.load %arg4[%c0_4, %c0_5] : memref<32x128xbf16, #tpu.memory_space<vmem>>, vector<32x128xbf16>
    %cst = arith.constant dense<0.000000e+00> : vector<16x128xf32>
    %6 = tpu.matmul %4, %5, %cst {dimension_numbers = #tpu.dot_dimension_numbers<[1], [0], [0], [1], [0, 0, 1, 1], [], []>} : vector<16x32xbf16>, vector<32x128xbf16>, vector<16x128xf32> -> vector<16x128xf32>
    %7 = arith.addf %3, %6 : vector<16x128xf32>
    %c0_6 = arith.constant 0 : index
    %c0_7 = arith.constant 0 : index
    %8 = vector.load %arg7[%c0_6, %c0_7] : memref<16x128xf32, #tpu.memory_space<vmem>>, vector<16x128xf32>
    tpu.vector_store %arg7[%c0_6, %c0_7], %7 {strides = array<i32>} : memref<16x128xf32, #tpu.memory_space<vmem>>, vector<16x128xf32>,
    %c0_i32_8 = arith.constant 0 : i32
    %9 = arith.cmpi eq, %arg2, %c0_i32_8 : i32
    %10 = arith.extui %9 : i1 to i32
    %c0_i32_9 = arith.constant 0 : i32
    %11 = arith.cmpi ne, %10, %c0_i32_9 : i32
    scf.if %11 {
      %c0_10 = arith.constant 0 : index
      %c0_11 = arith.constant 0 : index
      %12 = vector.load %arg7[%c0_10, %c0_11] : memref<16x128xf32, #tpu.memory_space<vmem>>, vector<16x128xf32>
      %c0_12 = arith.constant 0 : index
      %c0_13 = arith.constant 0 : index
      %13 = vector.load %arg5[%c0_12, %c0_13] : memref<1x128xf32, #tpu.memory_space<vmem>>, vector<1x128xf32>
      %14 = vector.broadcast %13 : vector<1x128xf32> to vector<16x128xf32>
      %15 = arith.addf %12, %14 : vector<16x128xf32>
      %c0_14 = arith.constant 0 : index
      %c0_15 = arith.constant 0 : index
      %16 = vector.load %arg6[%c0_14, %c0_15] : memref<16x128xf32, #tpu.memory_space<vmem>>, vector<16x128xf32>
      tpu.vector_store %arg6[%c0_14, %c0_15], %15 {strides = array<i32>} : memref<16x128xf32, #tpu.memory_space<vmem>>, vector<16x128xf32>,
    } else {
    }
    return
  }
  func.func @transform_0(%arg0: i32, %arg1: i32, %arg2: i32) -> (i32, i32) {
    %c0_i32 = arith.constant 0 : i32
    %c0_i32_0 = arith.constant 0 : i32
    return %arg0, %c0_i32 : i32, i32
  }
  func.func @transform_1(%arg0: i32, %arg1: i32, %arg2: i32) -> (i32, i32) {
    %c0_i32 = arith.constant 0 : i32
    %c0_i32_0 = arith.constant 0 : i32
    return %c0_i32, %arg1 : i32, i32
  }
  func.func @transform_2(%arg0: i32, %arg1: i32, %arg2: i32) -> (i32, i32) {
    %c0_i32 = arith.constant 0 : i32
    %c0_i32_0 = arith.constant 0 : i32
    return %c0_i32, %arg1 : i32, i32
  }
  func.func @transform_3(%arg0: i32, %arg1: i32, %arg2: i32) -> (i32, i32) {
    %c0_i32 = arith.constant 0 : i32
    return %arg0, %arg1 : i32, i32
  }
}

module attributes {stable_mosaic.version = 11 : i64} {
  func.func @_encoder_layer_kernel(%arg0: i32, %arg1: memref<1x8x32xbf16, #tpu.memory_space<vmem>>, %arg2: memref<32x96xbf16, #tpu.memory_space<vmem>>, %arg3: memref<1x96xf32, #tpu.memory_space<vmem>>, %arg4: memref<32x32xbf16, #tpu.memory_space<vmem>>, %arg5: memref<1x32xf32, #tpu.memory_space<vmem>>, %arg6: memref<1x32xf32, #tpu.memory_space<vmem>>, %arg7: memref<1x32xf32, #tpu.memory_space<vmem>>, %arg8: memref<32x64xbf16, #tpu.memory_space<vmem>>, %arg9: memref<1x64xf32, #tpu.memory_space<vmem>>, %arg10: memref<64x32xbf16, #tpu.memory_space<vmem>>, %arg11: memref<1x32xf32, #tpu.memory_space<vmem>>, %arg12: memref<1x32xf32, #tpu.memory_space<vmem>>, %arg13: memref<1x32xf32, #tpu.memory_space<vmem>>, %arg14: memref<1x8x32xbf16, #tpu.memory_space<vmem>>) attributes {dimension_semantics = [#tpu.dimension_semantics<parallel>], iteration_bounds = array<i64: 2>, scalar_prefetch = 0 : i64, scratch_operands = 0 : i64, tpu.core_type = #tpu.core_type<tc>, window_params = [{transform_indices = @transform_0, window_bounds = array<i64: 1, 8, 32>}, {pipeline_mode = #tpu.pipeline_mode<synchronous>, transform_indices = @transform_1, window_bounds = array<i64: 32, 96>}, {pipeline_mode = #tpu.pipeline_mode<synchronous>, transform_indices = @transform_2, window_bounds = array<i64: 1, 96>}, {pipeline_mode = #tpu.pipeline_mode<synchronous>, transform_indices = @transform_3, window_bounds = array<i64: 32, 32>}, {pipeline_mode = #tpu.pipeline_mode<synchronous>, transform_indices = @transform_4, window_bounds = array<i64: 1, 32>}, {pipeline_mode = #tpu.pipeline_mode<synchronous>, transform_indices = @transform_5, window_bounds = array<i64: 1, 32>}, {pipeline_mode = #tpu.pipeline_mode<synchronous>, transform_indices = @transform_6, window_bounds = array<i64: 1, 32>}, {pipeline_mode = #tpu.pipeline_mode<synchronous>, transform_indices = @transform_7, window_bounds = array<i64: 32, 64>}, {pipeline_mode = #tpu.pipeline_mode<synchronous>, transform_indices = @transform_8, window_bounds = array<i64: 1, 64>}, {pipeline_mode = #tpu.pipeline_mode<synchronous>, transform_indices = @transform_9, window_bounds = array<i64: 64, 32>}, {pipeline_mode = #tpu.pipeline_mode<synchronous>, transform_indices = @transform_10, window_bounds = array<i64: 1, 32>}, {pipeline_mode = #tpu.pipeline_mode<synchronous>, transform_indices = @transform_11, window_bounds = array<i64: 1, 32>}, {pipeline_mode = #tpu.pipeline_mode<synchronous>, transform_indices = @transform_12, window_bounds = array<i64: 1, 32>}, {transform_indices = @transform_13, window_bounds = array<i64: 1, 8, 32>}]} {
    %c0 = arith.constant 0 : index
    %c0_0 = arith.constant 0 : index
    %c0_1 = arith.constant 0 : index
    %0 = vector.load %arg1[%c0, %c0_0, %c0_1] : memref<1x8x32xbf16, #tpu.memory_space<vmem>>, vector<1x8x32xbf16>
    %1 = vector.shape_cast %0 : vector<1x8x32xbf16> to vector<8x32xbf16>
    %2 = arith.extf %1 : vector<8x32xbf16> to vector<8x32xf32>
    %c0_2 = arith.constant 0 : index
    %c0_3 = arith.constant 0 : index
    %3 = vector.load %arg2[%c0_2, %c0_3] : memref<32x96xbf16, #tpu.memory_space<vmem>>, vector<32x96xbf16>
    %cst = arith.constant dense<0.000000e+00> : vector<8x96xf32>
    %4 = tpu.matmul %1, %3, %cst {dimension_numbers = #tpu.dot_dimension_numbers<[1], [0], [0], [1], [0, 0, 1, 1], [], []>} : vector<8x32xbf16>, vector<32x96xbf16>, vector<8x96xf32> -> vector<8x96xf32>
    %c0_4 = arith.constant 0 : index
    %c0_5 = arith.constant 0 : index
    %5 = vector.load %arg3[%c0_4, %c0_5] : memref<1x96xf32, #tpu.memory_space<vmem>>, vector<1x96xf32>
    %6 = vector.broadcast %5 : vector<1x96xf32> to vector<8x96xf32>
    %7 = arith.addf %4, %6 : vector<8x96xf32>
    %8 = arith.truncf %7 : vector<8x96xf32> to vector<8x96xbf16>
    %9 = vector.extract_strided_slice %8 {offsets = [0, 0], sizes = [8, 32], strides = [1, 1]} : vector<8x96xbf16> to vector<8x32xbf16>
    %10 = vector.extract_strided_slice %8 {offsets = [0, 32], sizes = [8, 32], strides = [1, 1]} : vector<8x96xbf16> to vector<8x32xbf16>
    %11 = vector.extract_strided_slice %8 {offsets = [0, 64], sizes = [8, 32], strides = [1, 1]} : vector<8x96xbf16> to vector<8x32xbf16>
    %12 = vector.extract_strided_slice %9 {offsets = [0, 0], sizes = [8, 8], strides = [1, 1]} : vector<8x32xbf16> to vector<8x8xbf16>
    %13 = vector.extract_strided_slice %9 {offsets = [0, 8], sizes = [8, 8], strides = [1, 1]} : vector<8x32xbf16> to vector<8x8xbf16>
    %14 = vector.extract_strided_slice %9 {offsets = [0, 16], sizes = [8, 8], strides = [1, 1]} : vector<8x32xbf16> to vector<8x8xbf16>
    %15 = vector.extract_strided_slice %9 {offsets = [0, 24], sizes = [8, 8], strides = [1, 1]} : vector<8x32xbf16> to vector<8x8xbf16>
    %16 = vector.shape_cast %12 : vector<8x8xbf16> to vector<1x8x8xbf16>
    %17 = vector.shape_cast %13 : vector<8x8xbf16> to vector<1x8x8xbf16>
    %18 = vector.shape_cast %14 : vector<8x8xbf16> to vector<1x8x8xbf16>
    %19 = vector.shape_cast %15 : vector<8x8xbf16> to vector<1x8x8xbf16>
    %20 = tpu.concatenate %16, %17, %18, %19 in 0 : vector<1x8x8xbf16>, vector<1x8x8xbf16>, vector<1x8x8xbf16>, vector<1x8x8xbf16> -> vector<4x8x8xbf16>
    %21 = vector.extract_strided_slice %10 {offsets = [0, 0], sizes = [8, 8], strides = [1, 1]} : vector<8x32xbf16> to vector<8x8xbf16>
    %22 = vector.extract_strided_slice %10 {offsets = [0, 8], sizes = [8, 8], strides = [1, 1]} : vector<8x32xbf16> to vector<8x8xbf16>
    %23 = vector.extract_strided_slice %10 {offsets = [0, 16], sizes = [8, 8], strides = [1, 1]} : vector<8x32xbf16> to vector<8x8xbf16>
    %24 = vector.extract_strided_slice %10 {offsets = [0, 24], sizes = [8, 8], strides = [1, 1]} : vector<8x32xbf16> to vector<8x8xbf16>
    %25 = vector.shape_cast %21 : vector<8x8xbf16> to vector<1x8x8xbf16>
    %26 = vector.shape_cast %22 : vector<8x8xbf16> to vector<1x8x8xbf16>
    %27 = vector.shape_cast %23 : vector<8x8xbf16> to vector<1x8x8xbf16>
    %28 = vector.shape_cast %24 : vector<8x8xbf16> to vector<1x8x8xbf16>
    %29 = tpu.concatenate %25, %26, %27, %28 in 0 : vector<1x8x8xbf16>, vector<1x8x8xbf16>, vector<1x8x8xbf16>, vector<1x8x8xbf16> -> vector<4x8x8xbf16>
    %30 = vector.extract_strided_slice %11 {offsets = [0, 0], sizes = [8, 8], strides = [1, 1]} : vector<8x32xbf16> to vector<8x8xbf16>
    %31 = vector.extract_strided_slice %11 {offsets = [0, 8], sizes = [8, 8], strides = [1, 1]} : vector<8x32xbf16> to vector<8x8xbf16>
    %32 = vector.extract_strided_slice %11 {offsets = [0, 16], sizes = [8, 8], strides = [1, 1]} : vector<8x32xbf16> to vector<8x8xbf16>
    %33 = vector.extract_strided_slice %11 {offsets = [0, 24], sizes = [8, 8], strides = [1, 1]} : vector<8x32xbf16> to vector<8x8xbf16>
    %34 = vector.shape_cast %30 : vector<8x8xbf16> to vector<1x8x8xbf16>
    %35 = vector.shape_cast %31 : vector<8x8xbf16> to vector<1x8x8xbf16>
    %36 = vector.shape_cast %32 : vector<8x8xbf16> to vector<1x8x8xbf16>
    %37 = vector.shape_cast %33 : vector<8x8xbf16> to vector<1x8x8xbf16>
    %38 = tpu.concatenate %34, %35, %36, %37 in 0 : vector<1x8x8xbf16>, vector<1x8x8xbf16>, vector<1x8x8xbf16>, vector<1x8x8xbf16> -> vector<4x8x8xbf16>
    "tpu.trace_start"() <{level = 10 : i32, message = "hqd,hkd->hqk"}> : () -> ()
    %cst_6 = arith.constant dense<0.000000e+00> : vector<4x8x8xf32>
    %39 = tpu.matmul %20, %29, %cst_6 {dimension_numbers = #tpu.dot_dimension_numbers<[2], [2], [1], [1], [0, 0, 0, 1, 1, 1], [0], [0]>} : vector<4x8x8xbf16>, vector<4x8x8xbf16>, vector<4x8x8xf32> -> vector<4x8x8xf32>
    "tpu.trace_stop"() : () -> ()
    %cst_7 = arith.constant 0.353553385 : f32
    %40 = vector.broadcast %cst_7 : f32 to vector<4x8x8xf32>
    %41 = arith.mulf %39, %40 : vector<4x8x8xf32>
    %cst_8 = arith.constant dense<0xFF800000> : vector<4x8xf32>
    %42 = vector.multi_reduction <maximumf>, %41, %cst_8 [2] : vector<4x8x8xf32> to vector<4x8xf32>
    %43 = vector.shape_cast %42 : vector<4x8xf32> to vector<4x8x1xf32>
    %44 = vector.broadcast %43 : vector<4x8x1xf32> to vector<4x8x8xf32>
    %45 = arith.subf %41, %44 : vector<4x8x8xf32>
    %46 = math.exp %45 : vector<4x8x8xf32>
    %cst_9 = arith.constant dense<0.000000e+00> : vector<4x8xf32>
    %47 = vector.multi_reduction <add>, %46, %cst_9 [2] : vector<4x8x8xf32> to vector<4x8xf32>
    %48 = vector.shape_cast %47 : vector<4x8xf32> to vector<4x8x1xf32>
    %49 = tpu.reciprocal %48 {approx = true} : vector<4x8x1xf32> -> vector<4x8x1xf32>
    %50 = vector.broadcast %49 : vector<4x8x1xf32> to vector<4x8x8xf32>
    %51 = arith.mulf %46, %50 : vector<4x8x8xf32>
    %52 = arith.truncf %51 : vector<4x8x8xf32> to vector<4x8x8xbf16>
    "tpu.trace_start"() <{level = 10 : i32, message = "hqk,hkd->hqd"}> : () -> ()
    %cst_10 = arith.constant dense<0.000000e+00> : vector<4x8x8xf32>
    %53 = tpu.matmul %52, %38, %cst_10 {dimension_numbers = #tpu.dot_dimension_numbers<[2], [1], [1], [2], [0, 0, 0, 1, 1, 2], [0], [0]>} : vector<4x8x8xbf16>, vector<4x8x8xbf16>, vector<4x8x8xf32> -> vector<4x8x8xf32>
    "tpu.trace_stop"() : () -> ()
    %54 = vector.extract_strided_slice %53 {offsets = [0, 0, 0], sizes = [1, 8, 8], strides = [1, 1, 1]} : vector<4x8x8xf32> to vector<1x8x8xf32>
    %55 = vector.shape_cast %54 : vector<1x8x8xf32> to vector<8x8xf32>
    %56 = vector.extract_strided_slice %53 {offsets = [1, 0, 0], sizes = [1, 8, 8], strides = [1, 1, 1]} : vector<4x8x8xf32> to vector<1x8x8xf32>
    %57 = vector.shape_cast %56 : vector<1x8x8xf32> to vector<8x8xf32>
    %58 = vector.extract_strided_slice %53 {offsets = [2, 0, 0], sizes = [1, 8, 8], strides = [1, 1, 1]} : vector<4x8x8xf32> to vector<1x8x8xf32>
    %59 = vector.shape_cast %58 : vector<1x8x8xf32> to vector<8x8xf32>
    %60 = vector.extract_strided_slice %53 {offsets = [3, 0, 0], sizes = [1, 8, 8], strides = [1, 1, 1]} : vector<4x8x8xf32> to vector<1x8x8xf32>
    %61 = vector.shape_cast %60 : vector<1x8x8xf32> to vector<8x8xf32>
    %62 = tpu.concatenate %55, %57, %59, %61 in 1 : vector<8x8xf32>, vector<8x8xf32>, vector<8x8xf32>, vector<8x8xf32> -> vector<8x32xf32>
    %63 = arith.truncf %62 : vector<8x32xf32> to vector<8x32xbf16>
    %c0_11 = arith.constant 0 : index
    %c0_12 = arith.constant 0 : index
    %64 = vector.load %arg4[%c0_11, %c0_12] : memref<32x32xbf16, #tpu.memory_space<vmem>>, vector<32x32xbf16>
    %cst_13 = arith.constant dense<0.000000e+00> : vector<8x32xf32>
    %65 = tpu.matmul %63, %64, %cst_13 {dimension_numbers = #tpu.dot_dimension_numbers<[1], [0], [0], [1], [0, 0, 1, 1], [], []>} : vector<8x32xbf16>, vector<32x32xbf16>, vector<8x32xf32> -> vector<8x32xf32>
    %c0_14 = arith.constant 0 : index
    %c0_15 = arith.constant 0 : index
    %66 = vector.load %arg5[%c0_14, %c0_15] : memref<1x32xf32, #tpu.memory_space<vmem>>, vector<1x32xf32>
    %67 = vector.broadcast %66 : vector<1x32xf32> to vector<8x32xf32>
    %68 = arith.addf %65, %67 : vector<8x32xf32>
    %69 = arith.addf %2, %68 : vector<8x32xf32>
    %c0_16 = arith.constant 0 : index
    %c0_17 = arith.constant 0 : index
    %70 = vector.load %arg6[%c0_16, %c0_17] : memref<1x32xf32, #tpu.memory_space<vmem>>, vector<1x32xf32>
    %c0_18 = arith.constant 0 : index
    %c0_19 = arith.constant 0 : index
    %71 = vector.load %arg7[%c0_18, %c0_19] : memref<1x32xf32, #tpu.memory_space<vmem>>, vector<1x32xf32>
    %cst_20 = arith.constant dense<0.000000e+00> : vector<8xf32>
    %72 = vector.multi_reduction <add>, %69, %cst_20 [1] : vector<8x32xf32> to vector<8xf32>
    %73 = vector.shape_cast %72 : vector<8xf32> to vector<8x1xf32>
    %cst_21 = arith.constant 3.200000e+01 : f32
    %74 = vector.broadcast %cst_21 : f32 to vector<8x1xf32>
    %75 = arith.divf %73, %74 : vector<8x1xf32>
    %76 = vector.broadcast %75 : vector<8x1xf32> to vector<8x32xf32>
    %77 = arith.subf %69, %76 : vector<8x32xf32>
    %78 = arith.mulf %77, %77 : vector<8x32xf32>
    %cst_22 = arith.constant dense<0.000000e+00> : vector<8xf32>
    %79 = vector.multi_reduction <add>, %78, %cst_22 [1] : vector<8x32xf32> to vector<8xf32>
    %80 = vector.shape_cast %79 : vector<8xf32> to vector<8x1xf32>
    %cst_23 = arith.constant 3.200000e+01 : f32
    %81 = vector.broadcast %cst_23 : f32 to vector<8x1xf32>
    %82 = arith.divf %80, %81 : vector<8x1xf32>
    %cst_24 = arith.constant 9.99999974E-6 : f32
    %83 = vector.broadcast %cst_24 : f32 to vector<8x1xf32>
    %84 = arith.addf %82, %83 : vector<8x1xf32>
    %85 = math.rsqrt %84 : vector<8x1xf32>
    %86 = vector.broadcast %85 : vector<8x1xf32> to vector<8x32xf32>
    %87 = arith.mulf %77, %86 : vector<8x32xf32>
    %88 = vector.broadcast %70 : vector<1x32xf32> to vector<8x32xf32>
    %89 = arith.mulf %87, %88 : vector<8x32xf32>
    %90 = vector.broadcast %71 : vector<1x32xf32> to vector<8x32xf32>
    %91 = arith.addf %89, %90 : vector<8x32xf32>
    %92 = arith.truncf %91 : vector<8x32xf32> to vector<8x32xbf16>
    %c0_25 = arith.constant 0 : index
    %c0_26 = arith.constant 0 : index
    %93 = vector.load %arg8[%c0_25, %c0_26] : memref<32x64xbf16, #tpu.memory_space<vmem>>, vector<32x64xbf16>
    %cst_27 = arith.constant dense<0.000000e+00> : vector<8x64xf32>
    %94 = tpu.matmul %92, %93, %cst_27 {dimension_numbers = #tpu.dot_dimension_numbers<[1], [0], [0], [1], [0, 0, 1, 1], [], []>} : vector<8x32xbf16>, vector<32x64xbf16>, vector<8x64xf32> -> vector<8x64xf32>
    %c0_28 = arith.constant 0 : index
    %c0_29 = arith.constant 0 : index
    %95 = vector.load %arg9[%c0_28, %c0_29] : memref<1x64xf32, #tpu.memory_space<vmem>>, vector<1x64xf32>
    %96 = vector.broadcast %95 : vector<1x64xf32> to vector<8x64xf32>
    %97 = arith.addf %94, %96 : vector<8x64xf32>
    %cst_30 = arith.constant 0.000000e+00 : f32
    %98 = vector.broadcast %cst_30 : f32 to vector<8x64xf32>
    %99 = arith.maximumf %97, %98 : vector<8x64xf32>
    %100 = arith.truncf %99 : vector<8x64xf32> to vector<8x64xbf16>
    %c0_31 = arith.constant 0 : index
    %c0_32 = arith.constant 0 : index
    %101 = vector.load %arg10[%c0_31, %c0_32] : memref<64x32xbf16, #tpu.memory_space<vmem>>, vector<64x32xbf16>
    %cst_33 = arith.constant dense<0.000000e+00> : vector<8x32xf32>
    %102 = tpu.matmul %100, %101, %cst_33 {dimension_numbers = #tpu.dot_dimension_numbers<[1], [0], [0], [1], [0, 0, 1, 1], [], []>} : vector<8x64xbf16>, vector<64x32xbf16>, vector<8x32xf32> -> vector<8x32xf32>
    %c0_34 = arith.constant 0 : index
    %c0_35 = arith.constant 0 : index
    %103 = vector.load %arg11[%c0_34, %c0_35] : memref<1x32xf32, #tpu.memory_space<vmem>>, vector<1x32xf32>
    %104 = vector.broadcast %103 : vector<1x32xf32> to vector<8x32xf32>
    %105 = arith.addf %102, %104 : vector<8x32xf32>
    %106 = arith.addf %91, %105 : vector<8x32xf32>
    %c0_36 = arith.constant 0 : index
    %c0_37 = arith.constant 0 : index
    %107 = vector.load %arg12[%c0_36, %c0_37] : memref<1x32xf32, #tpu.memory_space<vmem>>, vector<1x32xf32>
    %c0_38 = arith.constant 0 : index
    %c0_39 = arith.constant 0 : index
    %108 = vector.load %arg13[%c0_38, %c0_39] : memref<1x32xf32, #tpu.memory_space<vmem>>, vector<1x32xf32>
    %cst_40 = arith.constant dense<0.000000e+00> : vector<8xf32>
    %109 = vector.multi_reduction <add>, %106, %cst_40 [1] : vector<8x32xf32> to vector<8xf32>
    %110 = vector.shape_cast %109 : vector<8xf32> to vector<8x1xf32>
    %cst_41 = arith.constant 3.200000e+01 : f32
    %111 = vector.broadcast %cst_41 : f32 to vector<8x1xf32>
    %112 = arith.divf %110, %111 : vector<8x1xf32>
    %113 = vector.broadcast %112 : vector<8x1xf32> to vector<8x32xf32>
    %114 = arith.subf %106, %113 : vector<8x32xf32>
    %115 = arith.mulf %114, %114 : vector<8x32xf32>
    %cst_42 = arith.constant dense<0.000000e+00> : vector<8xf32>
    %116 = vector.multi_reduction <add>, %115, %cst_42 [1] : vector<8x32xf32> to vector<8xf32>
    %117 = vector.shape_cast %116 : vector<8xf32> to vector<8x1xf32>
    %cst_43 = arith.constant 3.200000e+01 : f32
    %118 = vector.broadcast %cst_43 : f32 to vector<8x1xf32>
    %119 = arith.divf %117, %118 : vector<8x1xf32>
    %cst_44 = arith.constant 9.99999974E-6 : f32
    %120 = vector.broadcast %cst_44 : f32 to vector<8x1xf32>
    %121 = arith.addf %119, %120 : vector<8x1xf32>
    %122 = math.rsqrt %121 : vector<8x1xf32>
    %123 = vector.broadcast %122 : vector<8x1xf32> to vector<8x32xf32>
    %124 = arith.mulf %114, %123 : vector<8x32xf32>
    %125 = vector.broadcast %107 : vector<1x32xf32> to vector<8x32xf32>
    %126 = arith.mulf %124, %125 : vector<8x32xf32>
    %127 = vector.broadcast %108 : vector<1x32xf32> to vector<8x32xf32>
    %128 = arith.addf %126, %127 : vector<8x32xf32>
    %129 = arith.truncf %128 : vector<8x32xf32> to vector<8x32xbf16>
    %c0_45 = arith.constant 0 : index
    %c0_46 = arith.constant 0 : index
    %c0_47 = arith.constant 0 : index
    %130 = vector.load %arg14[%c0_45, %c0_46, %c0_47] : memref<1x8x32xbf16, #tpu.memory_space<vmem>>, vector<1x8x32xbf16>
    %131 = vector.shape_cast %130 : vector<1x8x32xbf16> to vector<8x32xbf16>
    %132 = vector.shape_cast %129 : vector<8x32xbf16> to vector<1x8x32xbf16>
    tpu.vector_store %arg14[%c0_45, %c0_46, %c0_47], %132 {strides = array<i32>} : memref<1x8x32xbf16, #tpu.memory_space<vmem>>, vector<1x8x32xbf16>,
    return
  }
  func.func @transform_0(%arg0: i32) -> (i32, i32, i32) {
    %c0_i32 = arith.constant 0 : i32
    %c0_i32_0 = arith.constant 0 : i32
    %c0_i32_1 = arith.constant 0 : i32
    return %arg0, %c0_i32, %c0_i32_0 : i32, i32, i32
  }
  func.func @transform_1(%arg0: i32) -> (i32, i32) {
    %c0_i32 = arith.constant 0 : i32
    %c0_i32_0 = arith.constant 0 : i32
    %c0_i32_1 = arith.constant 0 : i32
    return %c0_i32, %c0_i32_0 : i32, i32
  }
  func.func @transform_2(%arg0: i32) -> (i32, i32) {
    %c0_i32 = arith.constant 0 : i32
    %c0_i32_0 = arith.constant 0 : i32
    %c0_i32_1 = arith.constant 0 : i32
    return %c0_i32, %c0_i32_0 : i32, i32
  }
  func.func @transform_3(%arg0: i32) -> (i32, i32) {
    %c0_i32 = arith.constant 0 : i32
    %c0_i32_0 = arith.constant 0 : i32
    %c0_i32_1 = arith.constant 0 : i32
    return %c0_i32, %c0_i32_0 : i32, i32
  }
  func.func @transform_4(%arg0: i32) -> (i32, i32) {
    %c0_i32 = arith.constant 0 : i32
    %c0_i32_0 = arith.constant 0 : i32
    %c0_i32_1 = arith.constant 0 : i32
    return %c0_i32, %c0_i32_0 : i32, i32
  }
  func.func @transform_5(%arg0: i32) -> (i32, i32) {
    %c0_i32 = arith.constant 0 : i32
    %c0_i32_0 = arith.constant 0 : i32
    %c0_i32_1 = arith.constant 0 : i32
    return %c0_i32, %c0_i32_0 : i32, i32
  }
  func.func @transform_6(%arg0: i32) -> (i32, i32) {
    %c0_i32 = arith.constant 0 : i32
    %c0_i32_0 = arith.constant 0 : i32
    %c0_i32_1 = arith.constant 0 : i32
    return %c0_i32, %c0_i32_0 : i32, i32
  }
  func.func @transform_7(%arg0: i32) -> (i32, i32) {
    %c0_i32 = arith.constant 0 : i32
    %c0_i32_0 = arith.constant 0 : i32
    %c0_i32_1 = arith.constant 0 : i32
    return %c0_i32, %c0_i32_0 : i32, i32
  }
  func.func @transform_8(%arg0: i32) -> (i32, i32) {
    %c0_i32 = arith.constant 0 : i32
    %c0_i32_0 = arith.constant 0 : i32
    %c0_i32_1 = arith.constant 0 : i32
    return %c0_i32, %c0_i32_0 : i32, i32
  }
  func.func @transform_9(%arg0: i32) -> (i32, i32) {
    %c0_i32 = arith.constant 0 : i32
    %c0_i32_0 = arith.constant 0 : i32
    %c0_i32_1 = arith.constant 0 : i32
    return %c0_i32, %c0_i32_0 : i32, i32
  }
  func.func @transform_10(%arg0: i32) -> (i32, i32) {
    %c0_i32 = arith.constant 0 : i32
    %c0_i32_0 = arith.constant 0 : i32
    %c0_i32_1 = arith.constant 0 : i32
    return %c0_i32, %c0_i32_0 : i32, i32
  }
  func.func @transform_11(%arg0: i32) -> (i32, i32) {
    %c0_i32 = arith.constant 0 : i32
    %c0_i32_0 = arith.constant 0 : i32
    %c0_i32_1 = arith.constant 0 : i32
    return %c0_i32, %c0_i32_0 : i32, i32
  }
  func.func @transform_12(%arg0: i32) -> (i32, i32) {
    %c0_i32 = arith.constant 0 : i32
    %c0_i32_0 = arith.constant 0 : i32
    %c0_i32_1 = arith.constant 0 : i32
    return %c0_i32, %c0_i32_0 : i32, i32
  }
  func.func @transform_13(%arg0: i32) -> (i32, i32, i32) {
    %c0_i32 = arith.constant 0 : i32
    %c0_i32_0 = arith.constant 0 : i32
    %c0_i32_1 = arith.constant 0 : i32
    return %arg0, %c0_i32, %c0_i32_0 : i32, i32, i32
  }
}

</mosaic_0001>

<llo_original>
// kernel: my_model_forward.5
$region0: #{my_model_forward.5}
  #allocation0 [shape = 'u32[]', space=smem, size = 0x4, offset = 0x4, fixed_abs, tag = 'smem constant byte address 0x4 - core index']
  #allocation1 [shape = 'u32[144,128]{1,0:T(1,128)}', space=vmem, size = 0x12000, scoped, tag = 'internal scratch']
  #allocation2 [shape = 'f32[16,128]{1,0:T(8,128)}', space=vmem, size = 0x2000, scoped, tag = 'scratch operand']
  %s0 = inlined_call_operand.vmem [shape: bf16[16,32], index: 0, kind: input, shape index: {}]
  %s1 = inlined_call_operand.vmem [shape: bf16[32,128], index: 1, kind: input, shape index: {}]
  %s2 = inlined_call_operand.vmem [shape: f32[1,128], index: 2, kind: input, shape index: {}]
  %s3 = inlined_call_operand.vmem [shape: f32[16,128], index: 3, kind: output, shape index: {}]
  %s4 = sld [smem:[#allocation0]]
  $region30: #{my_model_forward.5} parent=0
    _
  %s6 = ssub.s32 1, %s4
  %s7 = scalar_select 0, %s6, %s4
  // Predicated region
  $region2: #{my_model_forward.5} parent=0 // pred_check
    _
  $region3: #{my_model_forward.5} parent=0 // pred_check_branch
    %9 = sbr.rel (0) target = $region5
  $region4: #{my_model_forward.5} parent=0 // pred_region
    _
  $region5: #{my_model_forward.5} parent=0 // pred_fallthru
    _
  // Predicated region
  $region6: #{my_model_forward.5} parent=0 // pred_check
    _
  $region7: #{my_model_forward.5} parent=0 // pred_check_branch
    %11 = sbr.rel (0) target = $region9
  $region8: #{my_model_forward.5} parent=0 // pred_region
    _
  $region9: #{my_model_forward.5} parent=0 // pred_fallthru
    _
  // Predicated region
  $region10: #{my_model_forward.5} parent=0 // pred_check
    _
  $region11: #{my_model_forward.5} parent=0 // pred_check_branch
    %13 = sbr.rel (0) target = $region13
  $region12: #{my_model_forward.5} parent=0 // pred_region
    _
  $region13: #{my_model_forward.5} parent=0 // pred_fallthru
    _
  %p15 = scmp.eq.s32.totalorder 0, 0
  // Predicated region
  $region14: #{my_model_forward.5} parent=0 // pred_check
    %p16 = pneg %p15
  $region15: #{my_model_forward.5} parent=0 // pred_check_branch
    %18 = sbr.rel (%p16) target = $region17
  $region16: #{my_model_forward.5} parent=0 // pred_region
    %19 = vst [vmem:[#allocation2] sm:$0xff] 0.0
    %20 = vst [vmem:[#allocation2 + $0x8] sm:$0xff] 0.0
  $region17: #{my_model_forward.5} parent=0 // pred_fallthru
    _
  %v21 = vld [vmem:[#allocation2] sm:$0xff]
  %v22 = vld [vmem:[#allocation2 + $0x8] sm:$0xff]
  %v23 = vld [vmem:[%s0] sm:$0xf]
  %v24 = vld [vmem:[%s0 + $0x4] sm:$0xf]
  %v25 = vld [vmem:[%s1] sm:$0xf]
  %v26 = vld [vmem:[%s1 + $0x4] sm:$0xf]
  %v27 = vld [vmem:[%s1 + $0x8] sm:$0xf]
  %v28 = vld [vmem:[%s1 + $0xc] sm:$0xf]
  %v31 = vunpack.c.l.b16 %v23
  %v32 = vunpack.c.l.b16 %v24
  %v33 = vpack.c.b16 %v32, %v31
  %v38 = vunpack.c.l.b16 %v25
  %v39 = vunpack.c.l.b16 %v26
  %v40 = vunpack.c.l.b16 %v27
  %v41 = vunpack.c.l.b16 %v28
  %v42 = vpack.c.b16 %v39, %v38
  %v43 = vpack.c.b16 %v41, %v40
  %vm46 = vcmask 261120
  %v48 = vsel %vm46, %v33, 0
  %50 = vmatprep.subr.bf16.mxu0 0
  %51 = vmatpush1.bf16.msra.mxu0 %v42
  %52 = vmatprep.subr.bf16.mxu0 0
  %53 = vmatpush1.bf16.msra.mxu0 %v43
  %54 = vmatprep.subr.bf16.mxu0 0
  %55 = vmatpush1.bf16.msra.mxu0 0
  %56 = vmatprep.subr.bf16.mxu0 0
  %57 = vmatpush1.bf16.msra.mxu0 0
  %58 = vmatprep.subr.bf16.mxu0 0
  %59 = vmatpush1.bf16.msra.mxu0 0
  %60 = vmatprep.subr.bf16.mxu0 0
  %61 = vmatpush1.bf16.msra.mxu0 0
  %62 = vmatprep.subr.bf16.mxu0 0
  %63 = vmatpush1.bf16.msra.mxu0 0
  %64 = vmatprep.subr.bf16.mxu0 0
  %65 = vmatpush1.bf16.msra.mxu0 0
  %66 = vmatprep.subr.bf16.mxu0 0
  %67 = vmatpush1.bf16.msra.mxu0 0
  %68 = vmatprep.subr.bf16.mxu0 0
  %69 = vmatpush1.bf16.msra.mxu0 0
  %70 = vmatprep.subr.bf16.mxu0 0
  %71 = vmatpush1.bf16.msra.mxu0 0
  %72 = vmatprep.subr.bf16.mxu0 0
  %73 = vmatpush1.bf16.msra.mxu0 0
  %74 = vmatprep.subr.bf16.mxu0 0
  %75 = vmatpush1.bf16.msra.mxu0 0
  %76 = vmatprep.subr.bf16.mxu0 0
  %77 = vmatpush1.bf16.msra.mxu0 0
  %78 = vmatprep.subr.bf16.mxu0 0
  %79 = vmatpush1.bf16.msra.mxu0 0
  %80 = vmatprep.subr.bf16.mxu0 0
  %81 = vmatpush1.bf16.msra.mxu0 0
  %82 = vmatprep.mubr.bf16.mxu0 0
  %83 = vmatmul.mubr.bf16.gmra.mrb[0].mxu0 %v48
  %v84 = vpop.f32.mrb[0].mxu0
  %v85 = vadd.f32 0.0, %v84
  %v86 = vpop.f32.mrb[0].mxu0
  %v87 = vpop.f32.mrb[0].mxu0
  %v88 = vadd.f32 0.0, %v87
  %v89 = vpop.f32.mrb[0].mxu0
  %90 = vdwg.mxu0
  %v91 = vadd.f32 %v21, %v85
  %v92 = vadd.f32 %v22, %v88
  %93 = vst [vmem:[#allocation2] sm:$0xff] %v91
  %94 = vst [vmem:[#allocation2 + $0x8] sm:$0xff] %v92
  // Predicated region
  $region18: #{my_model_forward.5} parent=0 // pred_check
    %p95 = pneg %p15
  $region19: #{my_model_forward.5} parent=0 // pred_check_branch
    %97 = sbr.rel (%p95) target = $region21
  $region20: #{my_model_forward.5} parent=0 // pred_region
    %v98 = vld [vmem:[#allocation2] sm:$0xff]
    %v99 = vld [vmem:[#allocation2 + $0x8] sm:$0xff]
    %v100 = vld [vmem:[%s2] sm:$0x1]
    %v102 = vlaneseq
    %v103 = vshrl.u32 %v102, 7
    %v104 = vsub.s32 0, %v103
    %v105 = vrot.slane %v100, %v104
    %v107 = vadd.f32 %v98, %v105
    %v108 = vadd.f32 %v99, %v105
    %109 = vst [vmem:[%s3] sm:$0xff] %v107
    %110 = vst [vmem:[%s3 + $0x8] sm:$0xff] %v108
  $region21: #{my_model_forward.5} parent=0 // pred_fallthru
    _
  // Predicated region
  $region22: #{my_model_forward.5} parent=0 // pred_check
    _
  $region23: #{my_model_forward.5} parent=0 // pred_check_branch
    %112 = sbr.rel (0) target = $region25
  $region24: #{my_model_forward.5} parent=0 // pred_region
    _
  $region25: #{my_model_forward.5} parent=0 // pred_fallthru
    _
  // Predicated region
  $region26: #{my_model_forward.5} parent=0 // pred_check
    _
  $region27: #{my_model_forward.5} parent=0 // pred_check_branch
    %114 = sbr.rel (0) target = $region29
  $region28: #{my_model_forward.5} parent=0 // pred_region
    _
  $region29: #{my_model_forward.5} parent=0 // pred_fallthru
    _

// kernel: my_model_forward.3
$region0: #{my_model_forward.3}
  #allocation0 [shape = 'u32[]', space=smem, size = 0x4, offset = 0x4, fixed_abs, tag = 'smem constant byte address 0x4 - core index']
  #allocation1 [shape = 'u32[144,128]{1,0:T(1,128)}', space=vmem, size = 0x12000, scoped, tag = 'internal scratch']
  %s0 = inlined_call_operand.vmem [shape: bf16[2,8,32], index: 0, kind: input, shape index: {}]
  %s1 = inlined_call_operand.vmem [shape: bf16[32,96], index: 1, kind: input, shape index: {}]
  %s2 = inlined_call_operand.vmem [shape: f32[1,96], index: 2, kind: input, shape index: {}]
  %s3 = inlined_call_operand.vmem [shape: bf16[32,32], index: 3, kind: input, shape index: {}]
  %s4 = inlined_call_operand.vmem [shape: f32[1,32], index: 4, kind: input, shape index: {}]
  %s5 = inlined_call_operand.vmem [shape: f32[1,32], index: 5, kind: input, shape index: {}]
  %s6 = inlined_call_operand.vmem [shape: f32[1,32], index: 6, kind: input, shape index: {}]
  %s7 = inlined_call_operand.vmem [shape: bf16[32,64], index: 7, kind: input, shape index: {}]
  %s8 = inlined_call_operand.vmem [shape: f32[1,64], index: 8, kind: input, shape index: {}]
  %s9 = inlined_call_operand.vmem [shape: bf16[64,32], index: 9, kind: input, shape index: {}]
  %s10 = inlined_call_operand.vmem [shape: f32[1,32], index: 10, kind: input, shape index: {}]
  %s11 = inlined_call_operand.vmem [shape: f32[1,32], index: 11, kind: input, shape index: {}]
  %s12 = inlined_call_operand.vmem [shape: f32[1,32], index: 12, kind: input, shape index: {}]
  %s13 = inlined_call_operand.vmem [shape: bf16[2,8,32], index: 13, kind: output, shape index: {}]
  %s14 = sld [smem:[#allocation0]]
  $region85: #{my_model_forward.3} parent=0
    _
  %s16 = ssub.s32 1, %s14
  %s17 = scalar_select 0, %s16, %s14
  loop: start=0, step=1, limit=4
  $region2: #{my_model_forward.3} parent=0 // loop_pre_header
    _
  $region3: #{my_model_forward.3} parent=0 // loop_header
    %s19 = sphi 0, %s23
    %p20 = scmp.ge.s32.totalorder %s19, 4
    %s29 = sphi 0, %s31
    %s32 = sphi 0, %s29
    %s33 = sphi 0, %s32
    %s49 = sphi 0, %s33
    %s53 = sphi 0, %s53
    %s55 = sphi 0, %s53
    %s56 = sphi 0, %s55
    %s70 = sphi 0, %s56
    %s74 = sphi 0, %s74
    %s76 = sphi 0, %s74
    %s77 = sphi 0, %s76
    %s91 = sphi 0, %s77
    %s95 = sphi 0, %s95
    %s97 = sphi 0, %s95
    %s98 = sphi 0, %s97
    %s112 = sphi 0, %s98
    %s116 = sphi 0, %s116
    %s118 = sphi 0, %s116
    %s119 = sphi 0, %s118
    %s133 = sphi 0, %s119
    %s137 = sphi 0, %s137
    %s139 = sphi 0, %s137
    %s140 = sphi 0, %s139
    %s154 = sphi 0, %s140
    %s158 = sphi 0, %s158
    %s160 = sphi 0, %s158
    %s161 = sphi 0, %s160
    %s175 = sphi 0, %s161
    %s179 = sphi 0, %s179
    %s181 = sphi 0, %s179
    %s182 = sphi 0, %s181
    %s196 = sphi 0, %s182
    %s200 = sphi 0, %s200
    %s202 = sphi 0, %s200
    %s203 = sphi 0, %s202
    %s217 = sphi 0, %s203
    %s221 = sphi 0, %s221
    %s223 = sphi 0, %s221
    %s224 = sphi 0, %s223
    %s238 = sphi 0, %s224
    %s242 = sphi 0, %s242
    %s244 = sphi 0, %s242
    %s245 = sphi 0, %s244
    %s259 = sphi 0, %s245
    %s263 = sphi 0, %s263
    %s265 = sphi 0, %s263
    %s266 = sphi 0, %s265
    %s280 = sphi 0, %s266
    %s284 = sphi 0, %s284
    %s286 = sphi 0, %s284
    %s287 = sphi 0, %s286
    %s301 = sphi 0, %s287
    %s307 = sphi 0, %s309
    %s310 = sphi 0, %s307
    %s311 = sphi 0, %s310
    %s327 = sphi 0, %s311
  $region4: #{my_model_forward.3} parent=0 // loop_header_branch
    %22 = sbr.rel (%p20) target = $region8
  $region5: #{my_model_forward.3} parent=0 // loop_body
    %s24 = ssub.s32 %s19, 1
    %s25 = ssub.s32 %s19, 2
    %s26 = sadd.s32 %s19, 1
    %s27 = ssub.s32 %s19, %s26
    %p28 = scmp.eq.s32.totalorder %s27, 0
    %s30 = sadd.s32 %s29, 1
    %s31 = scalar_select %p28, %s29, %s30
    %p34 = pneg %p28
    %p35 = scmp.eq.s32.totalorder %s19, 1
    %p36 = por %p34, %p35
    %p37 = scmp.ne.s32.totalorder %s29, %s32
    %p38 = scmp.eq.s32.totalorder %s19, 0
    %p39 = por %p37, %p38
    %p40 = scmp.ne.s32.totalorder %s29, %s32
    %p41 = scmp.eq.s32.totalorder %s24, 1
    %p42 = por %p40, %p41
    %p43 = scmp.ne.s32.totalorder %s32, %s33
    %p44 = scmp.eq.s32.totalorder %s24, 0
    %p45 = por %p43, %p44
    %p46 = scmp.ne.s32.totalorder %s32, %s33
    %p47 = scmp.eq.s32.totalorder %s25, 1
    %p48 = por %p46, %p47
    %p50 = scmp.ne.s32.totalorder %s33, %s49
    %p51 = scmp.eq.s32.totalorder %s25, 0
    %p52 = por %p50, %p51
    %s54 = sadd.s32 %s53, 1
    %p57 = scmp.eq.s32.totalorder %s19, 1
    %p58 = scmp.ne.s32.totalorder %s53, %s55
    %p59 = scmp.eq.s32.totalorder %s19, 0
    %p60 = por %p58, %p59
    %p61 = scmp.ne.s32.totalorder %s53, %s55
    %p62 = scmp.eq.s32.totalorder %s24, 1
    %p63 = por %p61, %p62
    %p64 = scmp.ne.s32.totalorder %s55, %s56
    %p65 = scmp.eq.s32.totalorder %s24, 0
    %p66 = por %p64, %p65
    %p67 = scmp.ne.s32.totalorder %s55, %s56
    %p68 = scmp.eq.s32.totalorder %s25, 1
    %p69 = por %p67, %p68
    %p71 = scmp.ne.s32.totalorder %s56, %s70
    %p72 = scmp.eq.s32.totalorder %s25, 0
    %p73 = por %p71, %p72
    %s75 = sadd.s32 %s74, 1
    %p78 = scmp.eq.s32.totalorder %s19, 1
    %p79 = scmp.ne.s32.totalorder %s74, %s76
    %p80 = scmp.eq.s32.totalorder %s19, 0
    %p81 = por %p79, %p80
    %p82 = scmp.ne.s32.totalorder %s74, %s76
    %p83 = scmp.eq.s32.totalorder %s24, 1
    %p84 = por %p82, %p83
    %p85 = scmp.ne.s32.totalorder %s76, %s77
    %p86 = scmp.eq.s32.totalorder %s24, 0
    %p87 = por %p85, %p86
    %p88 = scmp.ne.s32.totalorder %s76, %s77
    %p89 = scmp.eq.s32.totalorder %s25, 1
    %p90 = por %p88, %p89
    %p92 = scmp.ne.s32.totalorder %s77, %s91
    %p93 = scmp.eq.s32.totalorder %s25, 0
    %p94 = por %p92, %p93
    %s96 = sadd.s32 %s95, 1
    %p99 = scmp.eq.s32.totalorder %s19, 1
    %p100 = scmp.ne.s32.totalorder %s95, %s97
    %p101 = scmp.eq.s32.totalorder %s19, 0
    %p102 = por %p100, %p101
    %p103 = scmp.ne.s32.totalorder %s95, %s97
    %p104 = scmp.eq.s32.totalorder %s24, 1
    %p105 = por %p103, %p104
    %p106 = scmp.ne.s32.totalorder %s97, %s98
    %p107 = scmp.eq.s32.totalorder %s24, 0
    %p108 = por %p106, %p107
    %p109 = scmp.ne.s32.totalorder %s97, %s98
    %p110 = scmp.eq.s32.totalorder %s25, 1
    %p111 = por %p109, %p110
    %p113 = scmp.ne.s32.totalorder %s98, %s112
    %p114 = scmp.eq.s32.totalorder %s25, 0
    %p115 = por %p113, %p114
    %s117 = sadd.s32 %s116, 1
    %p120 = scmp.eq.s32.totalorder %s19, 1
    %p121 = scmp.ne.s32.totalorder %s116, %s118
    %p122 = scmp.eq.s32.totalorder %s19, 0
    %p123 = por %p121, %p122
    %p124 = scmp.ne.s32.totalorder %s116, %s118
    %p125 = scmp.eq.s32.totalorder %s24, 1
    %p126 = por %p124, %p125
    %p127 = scmp.ne.s32.totalorder %s118, %s119
    %p128 = scmp.eq.s32.totalorder %s24, 0
    %p129 = por %p127, %p128
    %p130 = scmp.ne.s32.totalorder %s118, %s119
    %p131 = scmp.eq.s32.totalorder %s25, 1
    %p132 = por %p130, %p131
    %p134 = scmp.ne.s32.totalorder %s119, %s133
    %p135 = scmp.eq.s32.totalorder %s25, 0
    %p136 = por %p134, %p135
    %s138 = sadd.s32 %s137, 1
    %p141 = scmp.eq.s32.totalorder %s19, 1
    %p142 = scmp.ne.s32.totalorder %s137, %s139
    %p143 = scmp.eq.s32.totalorder %s19, 0
    %p144 = por %p142, %p143
    %p145 = scmp.ne.s32.totalorder %s137, %s139
    %p146 = scmp.eq.s32.totalorder %s24, 1
    %p147 = por %p145, %p146
    %p148 = scmp.ne.s32.totalorder %s139, %s140
    %p149 = scmp.eq.s32.totalorder %s24, 0
    %p150 = por %p148, %p149
    %p151 = scmp.ne.s32.totalorder %s139, %s140
    %p152 = scmp.eq.s32.totalorder %s25, 1
    %p153 = por %p151, %p152
    %p155 = scmp.ne.s32.totalorder %s140, %s154
    %p156 = scmp.eq.s32.totalorder %s25, 0
    %p157 = por %p155, %p156
    %s159 = sadd.s32 %s158, 1
    %p162 = scmp.eq.s32.totalorder %s19, 1
    %p163 = scmp.ne.s32.totalorder %s158, %s160
    %p164 = scmp.eq.s32.totalorder %s19, 0
    %p165 = por %p163, %p164
    %p166 = scmp.ne.s32.totalorder %s158, %s160
    %p167 = scmp.eq.s32.totalorder %s24, 1
    %p168 = por %p166, %p167
    %p169 = scmp.ne.s32.totalorder %s160, %s161
    %p170 = scmp.eq.s32.totalorder %s24, 0
    %p171 = por %p169, %p170
    %p172 = scmp.ne.s32.totalorder %s160, %s161
    %p173 = scmp.eq.s32.totalorder %s25, 1
    %p174 = por %p172, %p173
    %p176 = scmp.ne.s32.totalorder %s161, %s175
    %p177 = scmp.eq.s32.totalorder %s25, 0
    %p178 = por %p176, %p177
    %s180 = sadd.s32 %s179, 1
    %p183 = scmp.eq.s32.totalorder %s19, 1
    %p184 = scmp.ne.s32.totalorder %s179, %s181
    %p185 = scmp.eq.s32.totalorder %s19, 0
    %p186 = por %p184, %p185
    %p187 = scmp.ne.s32.totalorder %s179, %s181
    %p188 = scmp.eq.s32.totalorder %s24, 1
    %p189 = por %p187, %p188
    %p190 = scmp.ne.s32.totalorder %s181, %s182
    %p191 = scmp.eq.s32.totalorder %s24, 0
    %p192 = por %p190, %p191
    %p193 = scmp.ne.s32.totalorder %s181, %s182
    %p194 = scmp.eq.s32.totalorder %s25, 1
    %p195 = por %p193, %p194
    %p197 = scmp.ne.s32.totalorder %s182, %s196
    %p198 = scmp.eq.s32.totalorder %s25, 0
    %p199 = por %p197, %p198
    %s201 = sadd.s32 %s200, 1
    %p204 = scmp.eq.s32.totalorder %s19, 1
    %p205 = scmp.ne.s32.totalorder %s200, %s202
    %p206 = scmp.eq.s32.totalorder %s19, 0
    %p207 = por %p205, %p206
    %p208 = scmp.ne.s32.totalorder %s200, %s202
    %p209 = scmp.eq.s32.totalorder %s24, 1
    %p210 = por %p208, %p209
    %p211 = scmp.ne.s32.totalorder %s202, %s203
    %p212 = scmp.eq.s32.totalorder %s24, 0
    %p213 = por %p211, %p212
    %p214 = scmp.ne.s32.totalorder %s202, %s203
    %p215 = scmp.eq.s32.totalorder %s25, 1
    %p216 = por %p214, %p215
    %p218 = scmp.ne.s32.totalorder %s203, %s217
    %p219 = scmp.eq.s32.totalorder %s25, 0
    %p220 = por %p218, %p219
    %s222 = sadd.s32 %s221, 1
    %p225 = scmp.eq.s32.totalorder %s19, 1
    %p226 = scmp.ne.s32.totalorder %s221, %s223
    %p227 = scmp.eq.s32.totalorder %s19, 0
    %p228 = por %p226, %p227
    %p229 = scmp.ne.s32.totalorder %s221, %s223
    %p230 = scmp.eq.s32.totalorder %s24, 1
    %p231 = por %p229, %p230
    %p232 = scmp.ne.s32.totalorder %s223, %s224
    %p233 = scmp.eq.s32.totalorder %s24, 0
    %p234 = por %p232, %p233
    %p235 = scmp.ne.s32.totalorder %s223, %s224
    %p236 = scmp.eq.s32.totalorder %s25, 1
    %p237 = por %p235, %p236
    %p239 = scmp.ne.s32.totalorder %s224, %s238
    %p240 = scmp.eq.s32.totalorder %s25, 0
    %p241 = por %p239, %p240
    %s243 = sadd.s32 %s242, 1
    %p246 = scmp.eq.s32.totalorder %s19, 1
    %p247 = scmp.ne.s32.totalorder %s242, %s244
    %p248 = scmp.eq.s32.totalorder %s19, 0
    %p249 = por %p247, %p248
    %p250 = scmp.ne.s32.totalorder %s242, %s244
    %p251 = scmp.eq.s32.totalorder %s24, 1
    %p252 = por %p250, %p251
    %p253 = scmp.ne.s32.totalorder %s244, %s245
    %p254 = scmp.eq.s32.totalorder %s24, 0
    %p255 = por %p253, %p254
    %p256 = scmp.ne.s32.totalorder %s244, %s245
    %p257 = scmp.eq.s32.totalorder %s25, 1
    %p258 = por %p256, %p257
    %p260 = scmp.ne.s32.totalorder %s245, %s259
    %p261 = scmp.eq.s32.totalorder %s25, 0
    %p262 = por %p260, %p261
    %s264 = sadd.s32 %s263, 1
    %p267 = scmp.eq.s32.totalorder %s19, 1
    %p268 = scmp.ne.s32.totalorder %s263, %s265
    %p269 = scmp.eq.s32.totalorder %s19, 0
    %p270 = por %p268, %p269
    %p271 = scmp.ne.s32.totalorder %s263, %s265
    %p272 = scmp.eq.s32.totalorder %s24, 1
    %p273 = por %p271, %p272
    %p274 = scmp.ne.s32.totalorder %s265, %s266
    %p275 = scmp.eq.s32.totalorder %s24, 0
    %p276 = por %p274, %p275
    %p277 = scmp.ne.s32.totalorder %s265, %s266
    %p278 = scmp.eq.s32.totalorder %s25, 1
    %p279 = por %p277, %p278
    %p281 = scmp.ne.s32.totalorder %s266, %s280
    %p282 = scmp.eq.s32.totalorder %s25, 0
    %p283 = por %p281, %p282
    %s285 = sadd.s32 %s284, 1
    %p288 = scmp.eq.s32.totalorder %s19, 1
    %p289 = scmp.ne.s32.totalorder %s284, %s286
    %p290 = scmp.eq.s32.totalorder %s19, 0
    %p291 = por %p289, %p290
    %p292 = scmp.ne.s32.totalorder %s284, %s286
    %p293 = scmp.eq.s32.totalorder %s24, 1
    %p294 = por %p292, %p293
    %p295 = scmp.ne.s32.totalorder %s286, %s287
    %p296 = scmp.eq.s32.totalorder %s24, 0
    %p297 = por %p295, %p296
    %p298 = scmp.ne.s32.totalorder %s286, %s287
    %p299 = scmp.eq.s32.totalorder %s25, 1
    %p300 = por %p298, %p299
    %p302 = scmp.ne.s32.totalorder %s287, %s301
    %p303 = scmp.eq.s32.totalorder %s25, 0
    %p304 = por %p302, %p303
    %s305 = ssub.s32 %s19, %s26
    %p306 = scmp.eq.s32.totalorder %s305, 0
    %s308 = sadd.s32 %s307, 1
    %s309 = scalar_select %p306, %s307, %s308
    %p312 = pneg %p306
    %p313 = scmp.eq.s32.totalorder %s19, 1
    %p314 = por %p312, %p313
    %p315 = scmp.ne.s32.totalorder %s307, %s310
    %p316 = scmp.eq.s32.totalorder %s19, 0
    %p317 = por %p315, %p316
    %p318 = scmp.ne.s32.totalorder %s307, %s310
    %p319 = scmp.eq.s32.totalorder %s24, 1
    %p320 = por %p318, %p319
    %p321 = scmp.ne.s32.totalorder %s310, %s311
    %p322 = scmp.eq.s32.totalorder %s24, 0
    %p323 = por %p321, %p322
    %p324 = scmp.ne.s32.totalorder %s310, %s311
    %p325 = scmp.eq.s32.totalorder %s25, 1
    %p326 = por %p324, %p325
    %p328 = scmp.ne.s32.totalorder %s311, %s327
    %p329 = scmp.eq.s32.totalorder %s25, 0
    %p330 = por %p328, %p329
    %p331 = scmp.le.s32.totalorder 1, %s19
    %p332 = scmp.lt.s32.totalorder %s19, 3
    %p333 = pnand %p331, %p332
    %p334 = pneg %p333
    // Predicated region
    $region9: #{my_model_forward.3} parent=5 // pred_check
      _
    $region10: #{my_model_forward.3} parent=5 // pred_check_branch
      %336 = sbr.rel (%p333) target = $region12
    $region11: #{my_model_forward.3} parent=5 // pred_region
      %s337 = ssub.s32 %s19, 1
      // Predicated region
      $region13: #{my_model_forward.3} parent=11 // pred_check
        %p338 = pneg %p66
      $region14: #{my_model_forward.3} parent=11 // pred_check_branch
        %340 = sbr.rel (%p338) target = $region16
      $region15: #{my_model_forward.3} parent=11 // pred_region
        _
      $region16: #{my_model_forward.3} parent=11 // pred_fallthru
        _
      // Predicated region
      $region17: #{my_model_forward.3} parent=11 // pred_check
        %p341 = pneg %p87
      $region18: #{my_model_forward.3} parent=11 // pred_check_branch
        %343 = sbr.rel (%p341) target = $region20
      $region19: #{my_model_forward.3} parent=11 // pred_region
        _
      $region20: #{my_model_forward.3} parent=11 // pred_fallthru
        _
      // Predicated region
      $region21: #{my_model_forward.3} parent=11 // pred_check
        %p344 = pneg %p108
      $region22: #{my_model_forward.3} parent=11 // pred_check_branch
        %346 = sbr.rel (%p344) target = $region24
      $region23: #{my_model_forward.3} parent=11 // pred_region
        _
      $region24: #{my_model_forward.3} parent=11 // pred_fallthru
        _
      // Predicated region
      $region25: #{my_model_forward.3} parent=11 // pred_check
        %p347 = pneg %p129
      $region26: #{my_model_forward.3} parent=11 // pred_check_branch
        %349 = sbr.rel (%p347) target = $region28
      $region27: #{my_model_forward.3} parent=11 // pred_region
        _
      $region28: #{my_model_forward.3} parent=11 // pred_fallthru
        _
      // Predicated region
      $region29: #{my_model_forward.3} parent=11 // pred_check
        %p350 = pneg %p150
      $region30: #{my_model_forward.3} parent=11 // pred_check_branch
        %352 = sbr.rel (%p350) target = $region32
      $region31: #{my_model_forward.3} parent=11 // pred_region
        _
      $region32: #{my_model_forward.3} parent=11 // pred_fallthru
        _
      // Predicated region
      $region33: #{my_model_forward.3} parent=11 // pred_check
        %p353 = pneg %p171
      $region34: #{my_model_forward.3} parent=11 // pred_check_branch
        %355 = sbr.rel (%p353) target = $region36
      $region35: #{my_model_forward.3} parent=11 // pred_region
        _
      $region36: #{my_model_forward.3} parent=11 // pred_fallthru
        _
      // Predicated region
      $region37: #{my_model_forward.3} parent=11 // pred_check
        %p356 = pneg %p192
      $region38: #{my_model_forward.3} parent=11 // pred_check_branch
        %358 = sbr.rel (%p356) target = $region40
      $region39: #{my_model_forward.3} parent=11 // pred_region
        _
      $region40: #{my_model_forward.3} parent=11 // pred_fallthru
        _
      // Predicated region
      $region41: #{my_model_forward.3} parent=11 // pred_check
        %p359 = pneg %p213
      $region42: #{my_model_forward.3} parent=11 // pred_check_branch
        %361 = sbr.rel (%p359) target = $region44
      $region43: #{my_model_forward.3} parent=11 // pred_region
        _
      $region44: #{my_model_forward.3} parent=11 // pred_fallthru
        _
      // Predicated region
      $region45: #{my_model_forward.3} parent=11 // pred_check
        %p362 = pneg %p234
      $region46: #{my_model_forward.3} parent=11 // pred_check_branch
        %364 = sbr.rel (%p362) target = $region48
      $region47: #{my_model_forward.3} parent=11 // pred_region
        _
      $region48: #{my_model_forward.3} parent=11 // pred_fallthru
        _
      // Predicated region
      $region49: #{my_model_forward.3} parent=11 // pred_check
        %p365 = pneg %p255
      $region50: #{my_model_forward.3} parent=11 // pred_check_branch
        %367 = sbr.rel (%p365) target = $region52
      $region51: #{my_model_forward.3} parent=11 // pred_region
        _
      $region52: #{my_model_forward.3} parent=11 // pred_fallthru
        _
      // Predicated region
      $region53: #{my_model_forward.3} parent=11 // pred_check
        %p368 = pneg %p276
      $region54: #{my_model_forward.3} parent=11 // pred_check_branch
        %370 = sbr.rel (%p368) target = $region56
      $region55: #{my_model_forward.3} parent=11 // pred_region
        _
      $region56: #{my_model_forward.3} parent=11 // pred_fallthru
        _
      // Predicated region
      $region57: #{my_model_forward.3} parent=11 // pred_check
        %p371 = pneg %p297
      $region58: #{my_model_forward.3} parent=11 // pred_check_branch
        %373 = sbr.rel (%p371) target = $region60
      $region59: #{my_model_forward.3} parent=11 // pred_region
        _
      $region60: #{my_model_forward.3} parent=11 // pred_fallthru
        _
    $region12: #{my_model_forward.3} parent=5 // pred_fallthru
      _
    %p374 = scmp.lt.s32.totalorder %s19, 2
    // Predicated region
    $region61: #{my_model_forward.3} parent=5 // pred_check
      %p375 = pneg %p374
    $region62: #{my_model_forward.3} parent=5 // pred_check_branch
      %377 = sbr.rel (%p375) target = $region64
    $region63: #{my_model_forward.3} parent=5 // pred_region
      // Predicated region
      $region65: #{my_model_forward.3} parent=63 // pred_check
        %p378 = pneg %p39
      $region66: #{my_model_forward.3} parent=63 // pred_check_branch
        %380 = sbr.rel (%p378) target = $region68
      $region67: #{my_model_forward.3} parent=63 // pred_region
        %p381 = scmp.lt.s32.totalorder %s19, 1
        %s382 = scalar_select %p381, %s19, 1
        %s383 = smul.addr %s382, 4
        %s384 = scalar_lea.vmem %s0, %s383
      $region68: #{my_model_forward.3} parent=63 // pred_fallthru
        _
    $region64: #{my_model_forward.3} parent=5 // pred_fallthru
      _
    %p385 = scmp.le.s32.totalorder 1, %s19
    %p386 = scmp.lt.s32.totalorder %s19, 3
    %p387 = pnand %p385, %p386
    %p388 = pneg %p387
    // Predicated region
    $region69: #{my_model_forward.3} parent=5 // pred_check
      _
    $region70: #{my_model_forward.3} parent=5 // pred_check_branch
      %390 = sbr.rel (%p387) target = $region72
    $region71: #{my_model_forward.3} parent=5 // pred_region
      %s391 = ssub.s32 %s19, 1
      %p392 = scmp.lt.s32.totalorder %s24, 1
      %s393 = scalar_select %p392, %s24, 1
      %s394 = smul.addr %s393, 4
      %s395 = scalar_lea.vmem %s0, %s394
      %p396 = pneg %p45
      %p397 = pneg %p42
      %p398 = pneg %p66
      %p399 = pneg %p63
      %p400 = pneg %p87
      %p401 = pneg %p84
      %p402 = pneg %p108
      %p403 = pneg %p105
      %p404 = pneg %p129
      %p405 = pneg %p126
      %p406 = pneg %p150
      %p407 = pneg %p147
      %p408 = pneg %p171
      %p409 = pneg %p168
      %p410 = pneg %p192
      %p411 = pneg %p189
      %p412 = pneg %p213
      %p413 = pneg %p210
      %p414 = pneg %p234
      %p415 = pneg %p231
      %p416 = pneg %p255
      %p417 = pneg %p252
      %p418 = pneg %p276
      %p419 = pneg %p273
      %p420 = pneg %p297
      %p421 = pneg %p294
      %p422 = pneg %p323
      %p423 = pneg %p320
      %p424 = scmp.lt.s32.totalorder %s24, 1
      %s425 = scalar_select %p424, %s24, 1
      %s426 = smul.addr %s425, 4
      %s427 = scalar_lea.vmem %s13, %s426
      %p428 = scmp.lt.s32.totalorder %s24, 1
      %s429 = scalar_select %p428, %s24, 1
      %s430 = smul.addr %s429, 4
      %s431 = scalar_lea.vmem %s0, %s430
      %p432 = scmp.lt.s32.totalorder %s24, 1
      %s433 = scalar_select %p432, %s24, 1
      %s434 = smul.addr %s433, 4
      %s435 = scalar_lea.vmem %s13, %s434
      %v437 = vld [vmem:[%s431] sm:$0xf]
      %v438 = vunpack.c.l.bf16 %v437
      %v439 = vld [vmem:[%s1] sm:$0xf]
      %v440 = vld [vmem:[%s1 + $0x4] sm:$0xf]
      %v441 = vld [vmem:[%s1 + $0x8] sm:$0xf]
      %v442 = vld [vmem:[%s1 + $0xc] sm:$0xf]
      %v443 = vld [vmem:[%s2] sm:$0x1]
      %v445 = vlaneseq
      %v446 = vshrl.u32 %v445, 7
      %v447 = vsub.s32 0, %v446
      %v448 = vrot.slane %v443, %v447
      %v454 = vunpack.c.l.b16 %v439
      %v455 = vunpack.c.l.b16 %v440
      %v456 = vunpack.c.l.b16 %v441
      %v457 = vunpack.c.l.b16 %v442
      %v458 = vpack.c.b16 %v455, %v454
      %v459 = vpack.c.b16 %v457, %v456
      %vm462 = vcmask 261120
      %v464 = vsel %vm462, %v437, 0
      %466 = vmatprep.subr.bf16.mxu0 0
      %467 = vmatpush1.bf16.msra.mxu0 %v458
      %468 = vmatprep.subr.bf16.mxu0 0
      %469 = vmatpush1.bf16.msra.mxu0 %v459
      %470 = vmatprep.subr.bf16.mxu0 0
      %471 = vmatpush1.bf16.msra.mxu0 0
      %472 = vmatprep.subr.bf16.mxu0 0
      %473 = vmatpush1.bf16.msra.mxu0 0
      %474 = vmatprep.subr.bf16.mxu0 0
      %475 = vmatpush1.bf16.msra.mxu0 0
      %476 = vmatprep.subr.bf16.mxu0 0
      %477 = vmatpush1.bf16.msra.mxu0 0
      %478 = vmatprep.subr.bf16.mxu0 0
      %479 = vmatpush1.bf16.msra.mxu0 0
      %480 = vmatprep.subr.bf16.mxu0 0
      %481 = vmatpush1.bf16.msra.mxu0 0
      %482 = vmatprep.subr.bf16.mxu0 0
      %483 = vmatpush1.bf16.msra.mxu0 0
      %484 = vmatprep.subr.bf16.mxu0 0
      %485 = vmatpush1.bf16.msra.mxu0 0
      %486 = vmatprep.subr.bf16.mxu0 0
      %487 = vmatpush1.bf16.msra.mxu0 0
      %488 = vmatprep.subr.bf16.mxu0 0
      %489 = vmatpush1.bf16.msra.mxu0 0
      %490 = vmatprep.subr.bf16.mxu0 0
      %491 = vmatpush1.bf16.msra.mxu0 0
      %492 = vmatprep.subr.bf16.mxu0 0
      %493 = vmatpush1.bf16.msra.mxu0 0
      %494 = vmatprep.subr.bf16.mxu0 0
      %495 = vmatpush1.bf16.msra.mxu0 0
      %496 = vmatprep.subr.bf16.mxu0 0
      %497 = vmatpush1.bf16.msra.mxu0 0
      %498 = vmatprep.mubr.bf16.mxu0 0
      %499 = vmatmul.mubr.bf16.gmra.mrb[0].mxu0 %v464
      %v500 = vpop.f32.mrb[0].mxu0
      %v501 = vadd.f32 %v448, %v500
      %v502 = vpop.f32.mrb[0].mxu0
      %v503 = vpop.f32.mrb[0].mxu0
      %v504 = vpop.f32.mrb[0].mxu0
      %505 = vdwg.mxu0
      %v506 = vpack.c.bf16 %v501, %v501
      %508 = vrot.lane.b32.xlu0 %v506, 120
      %v509 = vpop.permute.xlu0 %508
      %510 = vrot.lane.b32.xlu0 %v506, 112
      %v511 = vpop.permute.xlu0 %510
      %512 = vrot.lane.b32.xlu0 %v506, 104
      %v513 = vpop.permute.xlu0 %512
      %514 = vrot.lane.b32.xlu0 %v506, 96
      %v515 = vpop.permute.xlu0 %514
      %vm516 = vcmask 64512
      %v518 = vsel %vm516, %v506, 0
      %v521 = vsel %vm516, %v515, 0
      %523 = vmatprep.subr.bf16.mxu0 0
      %524 = vmatpush1.bf16.xpose.msra.mxu0 %v521
      %525 = vmatprep.subr.bf16.mxu0 0
      %526 = vmatpush1.bf16.xpose.msra.mxu0 0
      %527 = vmatprep.subr.bf16.mxu0 0
      %528 = vmatpush1.bf16.xpose.msra.mxu0 0
      %529 = vmatprep.subr.bf16.mxu0 0
      %530 = vmatpush1.bf16.xpose.msra.mxu0 0
      %531 = vmatprep.subr.bf16.mxu0 0
      %532 = vmatpush1.bf16.xpose.msra.mxu0 0
      %533 = vmatprep.subr.bf16.mxu0 0
      %534 = vmatpush1.bf16.xpose.msra.mxu0 0
      %535 = vmatprep.subr.bf16.mxu0 0
      %536 = vmatpush1.bf16.xpose.msra.mxu0 0
      %537 = vmatprep.subr.bf16.mxu0 0
      %538 = vmatpush1.bf16.xpose.msra.mxu0 0
      %539 = vmatprep.subr.bf16.mxu0 0
      %540 = vmatpush1.bf16.xpose.msra.mxu0 0
      %541 = vmatprep.subr.bf16.mxu0 0
      %542 = vmatpush1.bf16.xpose.msra.mxu0 0
      %543 = vmatprep.subr.bf16.mxu0 0
      %544 = vmatpush1.bf16.xpose.msra.mxu0 0
      %545 = vmatprep.subr.bf16.mxu0 0
      %546 = vmatpush1.bf16.xpose.msra.mxu0 0
      %547 = vmatprep.subr.bf16.mxu0 0
      %548 = vmatpush1.bf16.xpose.msra.mxu0 0
      %549 = vmatprep.subr.bf16.mxu0 0
      %550 = vmatpush1.bf16.xpose.msra.mxu0 0
      %551 = vmatprep.subr.bf16.mxu0 0
      %552 = vmatpush1.bf16.xpose.msra.mxu0 0
      %553 = vmatprep.subr.bf16.mxu0 0
      %554 = vmatpush1.bf16.xpose.msra.mxu0 0
      %555 = vmatprep.mubr.bf16.mxu0 0
      %556 = vmatmul.mubr.bf16.gmra.mrb[0].mxu0 %v518
      %v557 = vpop.f32.mrb[0].mxu0
      %v558 = vadd.f32 0.0, %v557
      %v559 = vpop.f32.mrb[0].mxu0
      %v560 = vpop.f32.mrb[0].mxu0
      %v561 = vpop.f32.mrb[0].mxu0
      %562 = vdwg.mxu0
      %563 = vrot.lane.b32.xlu0 %v509, 96
      %v564 = vpop.permute.xlu0 %563
      %v566 = vsel %vm516, %v509, 0
      %v569 = vsel %vm516, %v564, 0
      %571 = vmatprep.subr.bf16.mxu0 0
      %572 = vmatpush1.bf16.xpose.msra.mxu0 %v569
      %573 = vmatprep.subr.bf16.mxu0 0
      %574 = vmatpush1.bf16.xpose.msra.mxu0 0
      %575 = vmatprep.subr.bf16.mxu0 0
      %576 = vmatpush1.bf16.xpose.msra.mxu0 0
      %577 = vmatprep.subr.bf16.mxu0 0
      %578 = vmatpush1.bf16.xpose.msra.mxu0 0
      %579 = vmatprep.subr.bf16.mxu0 0
      %580 = vmatpush1.bf16.xpose.msra.mxu0 0
      %581 = vmatprep.subr.bf16.mxu0 0
      %582 = vmatpush1.bf16.xpose.msra.mxu0 0
      %583 = vmatprep.subr.bf16.mxu0 0
      %584 = vmatpush1.bf16.xpose.msra.mxu0 0
      %585 = vmatprep.subr.bf16.mxu0 0
      %586 = vmatpush1.bf16.xpose.msra.mxu0 0
      %587 = vmatprep.subr.bf16.mxu0 0
      %588 = vmatpush1.bf16.xpose.msra.mxu0 0
      %589 = vmatprep.subr.bf16.mxu0 0
      %590 = vmatpush1.bf16.xpose.msra.mxu0 0
      %591 = vmatprep.subr.bf16.mxu0 0
      %592 = vmatpush1.bf16.xpose.msra.mxu0 0
      %593 = vmatprep.subr.bf16.mxu0 0
      %594 = vmatpush1.bf16.xpose.msra.mxu0 0
      %595 = vmatprep.subr.bf16.mxu0 0
      %596 = vmatpush1.bf16.xpose.msra.mxu0 0
      %597 = vmatprep.subr.bf16.mxu0 0
      %598 = vmatpush1.bf16.xpose.msra.mxu0 0
      %599 = vmatprep.subr.bf16.mxu0 0
      %600 = vmatpush1.bf16.xpose.msra.mxu0 0
      %601 = vmatprep.subr.bf16.mxu0 0
      %602 = vmatpush1.bf16.xpose.msra.mxu0 0
      %603 = vmatprep.mubr.bf16.mxu0 0
      %604 = vmatmul.mubr.bf16.gmra.mrb[0].mxu0 %v566
      %v605 = vpop.f32.mrb[0].mxu0
      %v606 = vadd.f32 0.0, %v605
      %v607 = vpop.f32.mrb[0].mxu0
      %v608 = vpop.f32.mrb[0].mxu0
      %v609 = vpop.f32.mrb[0].mxu0
      %610 = vdwg.mxu0
      %611 = vrot.lane.b32.xlu0 %v511, 96
      %v612 = vpop.permute.xlu0 %611
      %v614 = vsel %vm516, %v511, 0
      %v617 = vsel %vm516, %v612, 0
      %619 = vmatprep.subr.bf16.mxu0 0
      %620 = vmatpush1.bf16.xpose.msra.mxu0 %v617
      %621 = vmatprep.subr.bf16.mxu0 0
      %622 = vmatpush1.bf16.xpose.msra.mxu0 0
      %623 = vmatprep.subr.bf16.mxu0 0
      %624 = vmatpush1.bf16.xpose.msra.mxu0 0
      %625 = vmatprep.subr.bf16.mxu0 0
      %626 = vmatpush1.bf16.xpose.msra.mxu0 0
      %627 = vmatprep.subr.bf16.mxu0 0
      %628 = vmatpush1.bf16.xpose.msra.mxu0 0
      %629 = vmatprep.subr.bf16.mxu0 0
      %630 = vmatpush1.bf16.xpose.msra.mxu0 0
      %631 = vmatprep.subr.bf16.mxu0 0
      %632 = vmatpush1.bf16.xpose.msra.mxu0 0
      %633 = vmatprep.subr.bf16.mxu0 0
      %634 = vmatpush1.bf16.xpose.msra.mxu0 0
      %635 = vmatprep.subr.bf16.mxu0 0
      %636 = vmatpush1.bf16.xpose.msra.mxu0 0
      %637 = vmatprep.subr.bf16.mxu0 0
      %638 = vmatpush1.bf16.xpose.msra.mxu0 0
      %639 = vmatprep.subr.bf16.mxu0 0
      %640 = vmatpush1.bf16.xpose.msra.mxu0 0
      %641 = vmatprep.subr.bf16.mxu0 0
      %642 = vmatpush1.bf16.xpose.msra.mxu0 0
      %643 = vmatprep.subr.bf16.mxu0 0
      %644 = vmatpush1.bf16.xpose.msra.mxu0 0
      %645 = vmatprep.subr.bf16.mxu0 0
      %646 = vmatpush1.bf16.xpose.msra.mxu0 0
      %647 = vmatprep.subr.bf16.mxu0 0
      %648 = vmatpush1.bf16.xpose.msra.mxu0 0
      %649 = vmatprep.subr.bf16.mxu0 0
      %650 = vmatpush1.bf16.xpose.msra.mxu0 0
      %651 = vmatprep.mubr.bf16.mxu0 0
      %652 = vmatmul.mubr.bf16.gmra.mrb[0].mxu0 %v614
      %v653 = vpop.f32.mrb[0].mxu0
      %v654 = vadd.f32 0.0, %v653
      %v655 = vpop.f32.mrb[0].mxu0
      %v656 = vpop.f32.mrb[0].mxu0
      %v657 = vpop.f32.mrb[0].mxu0
      %658 = vdwg.mxu0
      %659 = vrot.lane.b32.xlu0 %v513, 96
      %v660 = vpop.permute.xlu0 %659
      %v662 = vsel %vm516, %v513, 0
      %v665 = vsel %vm516, %v660, 0
      %667 = vmatprep.subr.bf16.mxu0 0
      %668 = vmatpush1.bf16.xpose.msra.mxu0 %v665
      %669 = vmatprep.subr.bf16.mxu0 0
      %670 = vmatpush1.bf16.xpose.msra.mxu0 0
      %671 = vmatprep.subr.bf16.mxu0 0
      %672 = vmatpush1.bf16.xpose.msra.mxu0 0
      %673 = vmatprep.subr.bf16.mxu0 0
      %674 = vmatpush1.bf16.xpose.msra.mxu0 0
      %675 = vmatprep.subr.bf16.mxu0 0
      %676 = vmatpush1.bf16.xpose.msra.mxu0 0
      %677 = vmatprep.subr.bf16.mxu0 0
      %678 = vmatpush1.bf16.xpose.msra.mxu0 0
      %679 = vmatprep.subr.bf16.mxu0 0
      %680 = vmatpush1.bf16.xpose.msra.mxu0 0
      %681 = vmatprep.subr.bf16.mxu0 0
      %682 = vmatpush1.bf16.xpose.msra.mxu0 0
      %683 = vmatprep.subr.bf16.mxu0 0
      %684 = vmatpush1.bf16.xpose.msra.mxu0 0
      %685 = vmatprep.subr.bf16.mxu0 0
      %686 = vmatpush1.bf16.xpose.msra.mxu0 0
      %687 = vmatprep.subr.bf16.mxu0 0
      %688 = vmatpush1.bf16.xpose.msra.mxu0 0
      %689 = vmatprep.subr.bf16.mxu0 0
      %690 = vmatpush1.bf16.xpose.msra.mxu0 0
      %691 = vmatprep.subr.bf16.mxu0 0
      %692 = vmatpush1.bf16.xpose.msra.mxu0 0
      %693 = vmatprep.subr.bf16.mxu0 0
      %694 = vmatpush1.bf16.xpose.msra.mxu0 0
      %695 = vmatprep.subr.bf16.mxu0 0
      %696 = vmatpush1.bf16.xpose.msra.mxu0 0
      %697 = vmatprep.subr.bf16.mxu0 0
      %698 = vmatpush1.bf16.xpose.msra.mxu0 0
      %699 = vmatprep.mubr.bf16.mxu0 0
      %700 = vmatmul.mubr.bf16.gmra.mrb[0].mxu0 %v662
      %v701 = vpop.f32.mrb[0].mxu0
      %v702 = vadd.f32 0.0, %v701
      %v703 = vpop.f32.mrb[0].mxu0
      %v704 = vpop.f32.mrb[0].mxu0
      %v705 = vpop.f32.mrb[0].mxu0
      %706 = vdwg.mxu0
      %v707 = vmul.f32 %v558, 0.35355338
      %v708 = vmul.f32 %v606, 0.35355338
      %v709 = vmul.f32 %v654, 0.35355338
      %v710 = vmul.f32 %v702, 0.35355338
      %v711 = vsel %vm516, %v707, -inf
      %712 = vmax.xlane.f32.xlu0 %v711
      %v713 = vpop.xlane.xlu0 %712
      %v714 = vsel %vm516, %v708, -inf
      %715 = vmax.xlane.f32.xlu0 %v714
      %v716 = vpop.xlane.xlu0 %715
      %v717 = vsel %vm516, %v709, -inf
      %718 = vmax.xlane.f32.xlu0 %v717
      %v719 = vpop.xlane.xlu0 %718
      %v720 = vsel %vm516, %v710, -inf
      %721 = vmax.xlane.f32.xlu0 %v720
      %v722 = vpop.xlane.xlu0 %721
      %v723 = vsub.f32 %v707, %v713
      %v724 = vsub.f32 %v708, %v716
      %v725 = vsub.f32 %v709, %v719
      %v726 = vsub.f32 %v710, %v722
      %v727 = vmul.f32 %v723, 1.442695
      %v728 = vpow.pop %v727
      %v729 = vmul.f32 %v724, 1.442695
      %v730 = vpow.pop %v729
      %v731 = vmul.f32 %v725, 1.442695
      %v732 = vpow.pop %v731
      %v733 = vmul.f32 %v726, 1.442695
      %v734 = vpow.pop %v733
      %v735 = vsel %vm516, %v728, 0.0
      %736 = vadd.xlane.f32.xlu0 %v735
      %v737 = vpop.xlane.xlu0 %736
      %v738 = vsel %vm516, %v730, 0.0
      %739 = vadd.xlane.f32.xlu0 %v738
      %v740 = vpop.xlane.xlu0 %739
      %v741 = vsel %vm516, %v732, 0.0
      %742 = vadd.xlane.f32.xlu0 %v741
      %v743 = vpop.xlane.xlu0 %742
      %v744 = vsel %vm516, %v734, 0.0
      %745 = vadd.xlane.f32.xlu0 %v744
      %v746 = vpop.xlane.xlu0 %745
      %v747 = vrcp.pop %v737
      %v748 = vrcp.pop %v740
      %v749 = vrcp.pop %v743
      %v750 = vrcp.pop %v746
      %v751 = vmul.f32 %v728, %v747
      %v752 = vmul.f32 %v730, %v748
      %v753 = vmul.f32 %v732, %v749
      %v754 = vmul.f32 %v734, %v750
      %v755 = vpack.c.bf16 %v751, %v751
      %v756 = vpack.c.bf16 %v752, %v752
      %v757 = vpack.c.bf16 %v753, %v753
      %v758 = vpack.c.bf16 %v754, %v754
      %759 = vrot.lane.b32.xlu0 %v506, 64
      %v760 = vpop.permute.xlu0 %759
      %v762 = vsel %vm516, %v755, 0
      %vm764 = vcmask 1043456
      %v766 = vsel %vm764, %v760, 0
      %768 = vmatprep.subr.bf16.mxu0 0
      %769 = vmatpush1.bf16.msra.mxu0 %v766
      %770 = vmatprep.subr.bf16.mxu0 0
      %771 = vmatpush1.bf16.msra.mxu0 0
      %772 = vmatprep.subr.bf16.mxu0 0
      %773 = vmatpush1.bf16.msra.mxu0 0
      %774 = vmatprep.subr.bf16.mxu0 0
      %775 = vmatpush1.bf16.msra.mxu0 0
      %776 = vmatprep.subr.bf16.mxu0 0
      %777 = vmatpush1.bf16.msra.mxu0 0
      %778 = vmatprep.subr.bf16.mxu0 0
      %779 = vmatpush1.bf16.msra.mxu0 0
      %780 = vmatprep.subr.bf16.mxu0 0
      %781 = vmatpush1.bf16.msra.mxu0 0
      %782 = vmatprep.subr.bf16.mxu0 0
      %783 = vmatpush1.bf16.msra.mxu0 0
      %784 = vmatprep.subr.bf16.mxu0 0
      %785 = vmatpush1.bf16.msra.mxu0 0
      %786 = vmatprep.subr.bf16.mxu0 0
      %787 = vmatpush1.bf16.msra.mxu0 0
      %788 = vmatprep.subr.bf16.mxu0 0
      %789 = vmatpush1.bf16.msra.mxu0 0
      %790 = vmatprep.subr.bf16.mxu0 0
      %791 = vmatpush1.bf16.msra.mxu0 0
      %792 = vmatprep.subr.bf16.mxu0 0
      %793 = vmatpush1.bf16.msra.mxu0 0
      %794 = vmatprep.subr.bf16.mxu0 0
      %795 = vmatpush1.bf16.msra.mxu0 0
      %796 = vmatprep.subr.bf16.mxu0 0
      %797 = vmatpush1.bf16.msra.mxu0 0
      %798 = vmatprep.subr.bf16.mxu0 0
      %799 = vmatpush1.bf16.msra.mxu0 0
      %800 = vmatprep.mubr.bf16.mxu0 0
      %801 = vmatmul.mubr.bf16.gmra.mrb[0].mxu0 %v762
      %v802 = vpop.f32.mrb[0].mxu0
      %v803 = vadd.f32 0.0, %v802
      %v804 = vpop.f32.mrb[0].mxu0
      %v805 = vpop.f32.mrb[0].mxu0
      %v806 = vpop.f32.mrb[0].mxu0
      %807 = vdwg.mxu0
      %808 = vrot.lane.b32.xlu0 %v509, 64
      %v809 = vpop.permute.xlu0 %808
      %v811 = vsel %vm516, %v756, 0
      %v814 = vsel %vm764, %v809, 0
      %816 = vmatprep.subr.bf16.mxu0 0
      %817 = vmatpush1.bf16.msra.mxu0 %v814
      %818 = vmatprep.subr.bf16.mxu0 0
      %819 = vmatpush1.bf16.msra.mxu0 0
      %820 = vmatprep.subr.bf16.mxu0 0
      %821 = vmatpush1.bf16.msra.mxu0 0
      %822 = vmatprep.subr.bf16.mxu0 0
      %823 = vmatpush1.bf16.msra.mxu0 0
      %824 = vmatprep.subr.bf16.mxu0 0
      %825 = vmatpush1.bf16.msra.mxu0 0
      %826 = vmatprep.subr.bf16.mxu0 0
      %827 = vmatpush1.bf16.msra.mxu0 0
      %828 = vmatprep.subr.bf16.mxu0 0
      %829 = vmatpush1.bf16.msra.mxu0 0
      %830 = vmatprep.subr.bf16.mxu0 0
      %831 = vmatpush1.bf16.msra.mxu0 0
      %832 = vmatprep.subr.bf16.mxu0 0
      %833 = vmatpush1.bf16.msra.mxu0 0
      %834 = vmatprep.subr.bf16.mxu0 0
      %835 = vmatpush1.bf16.msra.mxu0 0
      %836 = vmatprep.subr.bf16.mxu0 0
      %837 = vmatpush1.bf16.msra.mxu0 0
      %838 = vmatprep.subr.bf16.mxu0 0
      %839 = vmatpush1.bf16.msra.mxu0 0
      %840 = vmatprep.subr.bf16.mxu0 0
      %841 = vmatpush1.bf16.msra.mxu0 0
      %842 = vmatprep.subr.bf16.mxu0 0
      %843 = vmatpush1.bf16.msra.mxu0 0
      %844 = vmatprep.subr.bf16.mxu0 0
      %845 = vmatpush1.bf16.msra.mxu0 0
      %846 = vmatprep.subr.bf16.mxu0 0
      %847 = vmatpush1.bf16.msra.mxu0 0
      %848 = vmatprep.mubr.bf16.mxu0 0
      %849 = vmatmul.mubr.bf16.gmra.mrb[0].mxu0 %v811
      %v850 = vpop.f32.mrb[0].mxu0
      %v851 = vadd.f32 0.0, %v850
      %v852 = vpop.f32.mrb[0].mxu0
      %v853 = vpop.f32.mrb[0].mxu0
      %v854 = vpop.f32.mrb[0].mxu0
      %855 = vdwg.mxu0
      %856 = vrot.lane.b32.xlu0 %v511, 64
      %v857 = vpop.permute.xlu0 %856
      %v859 = vsel %vm516, %v757, 0
      %v862 = vsel %vm764, %v857, 0
      %864 = vmatprep.subr.bf16.mxu0 0
      %865 = vmatpush1.bf16.msra.mxu0 %v862
      %866 = vmatprep.subr.bf16.mxu0 0
      %867 = vmatpush1.bf16.msra.mxu0 0
      %868 = vmatprep.subr.bf16.mxu0 0
      %869 = vmatpush1.bf16.msra.mxu0 0
      %870 = vmatprep.subr.bf16.mxu0 0
      %871 = vmatpush1.bf16.msra.mxu0 0
      %872 = vmatprep.subr.bf16.mxu0 0
      %873 = vmatpush1.bf16.msra.mxu0 0
      %874 = vmatprep.subr.bf16.mxu0 0
      %875 = vmatpush1.bf16.msra.mxu0 0
      %876 = vmatprep.subr.bf16.mxu0 0
      %877 = vmatpush1.bf16.msra.mxu0 0
      %878 = vmatprep.subr.bf16.mxu0 0
      %879 = vmatpush1.bf16.msra.mxu0 0
      %880 = vmatprep.subr.bf16.mxu0 0
      %881 = vmatpush1.bf16.msra.mxu0 0
      %882 = vmatprep.subr.bf16.mxu0 0
      %883 = vmatpush1.bf16.msra.mxu0 0
      %884 = vmatprep.subr.bf16.mxu0 0
      %885 = vmatpush1.bf16.msra.mxu0 0
      %886 = vmatprep.subr.bf16.mxu0 0
      %887 = vmatpush1.bf16.msra.mxu0 0
      %888 = vmatprep.subr.bf16.mxu0 0
      %889 = vmatpush1.bf16.msra.mxu0 0
      %890 = vmatprep.subr.bf16.mxu0 0
      %891 = vmatpush1.bf16.msra.mxu0 0
      %892 = vmatprep.subr.bf16.mxu0 0
      %893 = vmatpush1.bf16.msra.mxu0 0
      %894 = vmatprep.subr.bf16.mxu0 0
      %895 = vmatpush1.bf16.msra.mxu0 0
      %896 = vmatprep.mubr.bf16.mxu0 0
      %897 = vmatmul.mubr.bf16.gmra.mrb[0].mxu0 %v859
      %v898 = vpop.f32.mrb[0].mxu0
      %v899 = vadd.f32 0.0, %v898
      %v900 = vpop.f32.mrb[0].mxu0
      %v901 = vpop.f32.mrb[0].mxu0
      %v902 = vpop.f32.mrb[0].mxu0
      %903 = vdwg.mxu0
      %904 = vrot.lane.b32.xlu0 %v513, 64
      %v905 = vpop.permute.xlu0 %904
      %v907 = vsel %vm516, %v758, 0
      %v910 = vsel %vm764, %v905, 0
      %912 = vmatprep.subr.bf16.mxu0 0
      %913 = vmatpush1.bf16.msra.mxu0 %v910
      %914 = vmatprep.subr.bf16.mxu0 0
      %915 = vmatpush1.bf16.msra.mxu0 0
      %916 = vmatprep.subr.bf16.mxu0 0
      %917 = vmatpush1.bf16.msra.mxu0 0
      %918 = vmatprep.subr.bf16.mxu0 0
      %919 = vmatpush1.bf16.msra.mxu0 0
      %920 = vmatprep.subr.bf16.mxu0 0
      %921 = vmatpush1.bf16.msra.mxu0 0
      %922 = vmatprep.subr.bf16.mxu0 0
      %923 = vmatpush1.bf16.msra.mxu0 0
      %924 = vmatprep.subr.bf16.mxu0 0
      %925 = vmatpush1.bf16.msra.mxu0 0
      %926 = vmatprep.subr.bf16.mxu0 0
      %927 = vmatpush1.bf16.msra.mxu0 0
      %928 = vmatprep.subr.bf16.mxu0 0
      %929 = vmatpush1.bf16.msra.mxu0 0
      %930 = vmatprep.subr.bf16.mxu0 0
      %931 = vmatpush1.bf16.msra.mxu0 0
      %932 = vmatprep.subr.bf16.mxu0 0
      %933 = vmatpush1.bf16.msra.mxu0 0
      %934 = vmatprep.subr.bf16.mxu0 0
      %935 = vmatpush1.bf16.msra.mxu0 0
      %936 = vmatprep.subr.bf16.mxu0 0
      %937 = vmatpush1.bf16.msra.mxu0 0
      %938 = vmatprep.subr.bf16.mxu0 0
      %939 = vmatpush1.bf16.msra.mxu0 0
      %940 = vmatprep.subr.bf16.mxu0 0
      %941 = vmatpush1.bf16.msra.mxu0 0
      %942 = vmatprep.subr.bf16.mxu0 0
      %943 = vmatpush1.bf16.msra.mxu0 0
      %944 = vmatprep.mubr.bf16.mxu0 0
      %945 = vmatmul.mubr.bf16.gmra.mrb[0].mxu0 %v907
      %v946 = vpop.f32.mrb[0].mxu0
      %v947 = vadd.f32 0.0, %v946
      %v948 = vpop.f32.mrb[0].mxu0
      %v949 = vpop.f32.mrb[0].mxu0
      %v950 = vpop.f32.mrb[0].mxu0
      %951 = vdwg.mxu0
      %953 = vrot.lane.b32.xlu0 %v851, 8
      %v954 = vpop.permute.xlu0 %953
      %957 = vrot.lane.b32.xlu0 %v899, 16
      %v958 = vpop.permute.xlu0 %957
      %961 = vrot.lane.b32.xlu0 %v947, 24
      %v962 = vpop.permute.xlu0 %961
      %v964 = vsel %vm516, %v803, %v954
      %vm965 = vcmask 130048
      %v966 = vsel %vm965, %v964, %v958
      %vm967 = vcmask 195584
      %v968 = vsel %vm967, %v966, %v962
      %v969 = vpack.c.bf16 %v968, %v968
      %v970 = vld [vmem:[%s3] sm:$0xf]
      %v971 = vld [vmem:[%s3 + $0x4] sm:$0xf]
      %v972 = vld [vmem:[%s3 + $0x8] sm:$0xf]
      %v973 = vld [vmem:[%s3 + $0xc] sm:$0xf]
      %v974 = vld [vmem:[%s4] sm:$0x1]
      %v976 = vlaneseq
      %v977 = vshrl.u32 %v976, 7
      %v978 = vsub.s32 0, %v977
      %v979 = vrot.slane %v974, %v978
      %v985 = vunpack.c.l.b16 %v970
      %v986 = vunpack.c.l.b16 %v971
      %v987 = vunpack.c.l.b16 %v972
      %v988 = vunpack.c.l.b16 %v973
      %v989 = vpack.c.b16 %v986, %v985
      %v990 = vpack.c.b16 %v988, %v987
      %v994 = vsel %vm462, %v969, 0
      %996 = vmatprep.subr.bf16.mxu0 0
      %997 = vmatpush1.bf16.msra.mxu0 %v989
      %998 = vmatprep.subr.bf16.mxu0 0
      %999 = vmatpush1.bf16.msra.mxu0 %v990
      %1000 = vmatprep.subr.bf16.mxu0 0
      %1001 = vmatpush1.bf16.msra.mxu0 0
      %1002 = vmatprep.subr.bf16.mxu0 0
      %1003 = vmatpush1.bf16.msra.mxu0 0
      %1004 = vmatprep.subr.bf16.mxu0 0
      %1005 = vmatpush1.bf16.msra.mxu0 0
      %1006 = vmatprep.subr.bf16.mxu0 0
      %1007 = vmatpush1.bf16.msra.mxu0 0
      %1008 = vmatprep.subr.bf16.mxu0 0
      %1009 = vmatpush1.bf16.msra.mxu0 0
      %1010 = vmatprep.subr.bf16.mxu0 0
      %1011 = vmatpush1.bf16.msra.mxu0 0
      %1012 = vmatprep.subr.bf16.mxu0 0
      %1013 = vmatpush1.bf16.msra.mxu0 0
      %1014 = vmatprep.subr.bf16.mxu0 0
      %1015 = vmatpush1.bf16.msra.mxu0 0
      %1016 = vmatprep.subr.bf16.mxu0 0
      %1017 = vmatpush1.bf16.msra.mxu0 0
      %1018 = vmatprep.subr.bf16.mxu0 0
      %1019 = vmatpush1.bf16.msra.mxu0 0
      %1020 = vmatprep.subr.bf16.mxu0 0
      %1021 = vmatpush1.bf16.msra.mxu0 0
      %1022 = vmatprep.subr.bf16.mxu0 0
      %1023 = vmatpush1.bf16.msra.mxu0 0
      %1024 = vmatprep.subr.bf16.mxu0 0
      %1025 = vmatpush1.bf16.msra.mxu0 0
      %1026 = vmatprep.subr.bf16.mxu0 0
      %1027 = vmatpush1.bf16.msra.mxu0 0
      %1028 = vmatprep.mubr.bf16.mxu0 0
      %1029 = vmatmul.mubr.bf16.gmra.mrb[0].mxu0 %v994
      %v1030 = vpop.f32.mrb[0].mxu0
      %v1031 = vadd.f32 %v979, %v1030
      %v1032 = vpop.f32.mrb[0].mxu0
      %v1033 = vpop.f32.mrb[0].mxu0
      %v1034 = vpop.f32.mrb[0].mxu0
      %1035 = vdwg.mxu0
      %v1036 = vadd.f32 %v438, %v1031
      %v1037 = vld [vmem:[%s5] sm:$0x1]
      %v1038 = vld [vmem:[%s6] sm:$0x1]
      %v1039 = vsel %vm462, %v1036, 0.0
      %1040 = vadd.xlane.f32.xlu0 %v1039
      %v1041 = vpop.xlane.xlu0 %1040
      %v1042 = vrcp.pop 32.0
      %v1043 = vmul.f32 %v1041, %v1042
      %v1044 = vsub.f32 %v1036, %v1043
      %v1045 = vmul.f32 %v1044, %v1044
      %v1046 = vsel %vm462, %v1045, 0.0
      %1047 = vadd.xlane.f32.xlu0 %v1046
      %v1048 = vpop.xlane.xlu0 %1047
      %v1049 = vmul.f32 %v1048, %v1042
      %v1050 = vadd.f32 %v1049, 1e-05
      %v1051 = vrsqrt.pop %v1050
      %v1052 = vmul.f32 %v1044, %v1051
      %v1054 = vlaneseq
      %v1055 = vshrl.u32 %v1054, 7
      %v1056 = vsub.s32 0, %v1055
      %v1057 = vrot.slane %v1037, %v1056
      %v1059 = vmul.f32 %v1052, %v1057
      %v1061 = vlaneseq
      %v1062 = vshrl.u32 %v1061, 7
      %v1063 = vsub.s32 0, %v1062
      %v1064 = vrot.slane %v1038, %v1063
      %v1066 = vadd.f32 %v1059, %v1064
      %v1067 = vpack.c.bf16 %v1066, %v1066
      %v1068 = vld [vmem:[%s7] sm:$0xf]
      %v1069 = vld [vmem:[%s7 + $0x4] sm:$0xf]
      %v1070 = vld [vmem:[%s7 + $0x8] sm:$0xf]
      %v1071 = vld [vmem:[%s7 + $0xc] sm:$0xf]
      %v1072 = vld [vmem:[%s8] sm:$0x1]
      %v1074 = vlaneseq
      %v1075 = vshrl.u32 %v1074, 7
      %v1076 = vsub.s32 0, %v1075
      %v1077 = vrot.slane %v1072, %v1076
      %v1083 = vunpack.c.l.b16 %v1068
      %v1084 = vunpack.c.l.b16 %v1069
      %v1085 = vunpack.c.l.b16 %v1070
      %v1086 = vunpack.c.l.b16 %v1071
      %v1087 = vpack.c.b16 %v1084, %v1083
      %v1088 = vpack.c.b16 %v1086, %v1085
      %v1092 = vsel %vm462, %v1067, 0
      %1094 = vmatprep.subr.bf16.mxu0 0
      %1095 = vmatpush1.bf16.msra.mxu0 %v1087
      %1096 = vmatprep.subr.bf16.mxu0 0
      %1097 = vmatpush1.bf16.msra.mxu0 %v1088
      %1098 = vmatprep.subr.bf16.mxu0 0
      %1099 = vmatpush1.bf16.msra.mxu0 0
      %1100 = vmatprep.subr.bf16.mxu0 0
      %1101 = vmatpush1.bf16.msra.mxu0 0
      %1102 = vmatprep.subr.bf16.mxu0 0
      %1103 = vmatpush1.bf16.msra.mxu0 0
      %1104 = vmatprep.subr.bf16.mxu0 0
      %1105 = vmatpush1.bf16.msra.mxu0 0
      %1106 = vmatprep.subr.bf16.mxu0 0
      %1107 = vmatpush1.bf16.msra.mxu0 0
      %1108 = vmatprep.subr.bf16.mxu0 0
      %1109 = vmatpush1.bf16.msra.mxu0 0
      %1110 = vmatprep.subr.bf16.mxu0 0
      %1111 = vmatpush1.bf16.msra.mxu0 0
      %1112 = vmatprep.subr.bf16.mxu0 0
      %1113 = vmatpush1.bf16.msra.mxu0 0
      %1114 = vmatprep.subr.bf16.mxu0 0
      %1115 = vmatpush1.bf16.msra.mxu0 0
      %1116 = vmatprep.subr.bf16.mxu0 0
      %1117 = vmatpush1.bf16.msra.mxu0 0
      %1118 = vmatprep.subr.bf16.mxu0 0
      %1119 = vmatpush1.bf16.msra.mxu0 0
      %1120 = vmatprep.subr.bf16.mxu0 0
      %1121 = vmatpush1.bf16.msra.mxu0 0
      %1122 = vmatprep.subr.bf16.mxu0 0
      %1123 = vmatpush1.bf16.msra.mxu0 0
      %1124 = vmatprep.subr.bf16.mxu0 0
      %1125 = vmatpush1.bf16.msra.mxu0 0
      %1126 = vmatprep.mubr.bf16.mxu0 0
      %1127 = vmatmul.mubr.bf16.gmra.mrb[0].mxu0 %v1092
      %v1128 = vpop.f32.mrb[0].mxu0
      %v1129 = vadd.f32 %v1077, %v1128
      %v1130 = vpop.f32.mrb[0].mxu0
      %v1131 = vpop.f32.mrb[0].mxu0
      %v1132 = vpop.f32.mrb[0].mxu0
      %1133 = vdwg.mxu0
      %v1134 = vmax.f32 %v1129, 0.0
      %v1135 = vpack.c.bf16 %v1134, %v1134
      %v1136 = vld [vmem:[%s9] sm:$0xf]
      %v1137 = vld [vmem:[%s9 + $0x4] sm:$0xf]
      %v1138 = vld [vmem:[%s9 + $0x8] sm:$0xf]
      %v1139 = vld [vmem:[%s9 + $0xc] sm:$0xf]
      %v1140 = vld [vmem:[%s9 + $0x10] sm:$0xf]
      %v1141 = vld [vmem:[%s9 + $0x14] sm:$0xf]
      %v1142 = vld [vmem:[%s9 + $0x18] sm:$0xf]
      %v1143 = vld [vmem:[%s9 + $0x1c] sm:$0xf]
      %v1144 = vld [vmem:[%s10] sm:$0x1]
      %v1146 = vlaneseq
      %v1147 = vshrl.u32 %v1146, 7
      %v1148 = vsub.s32 0, %v1147
      %v1149 = vrot.slane %v1144, %v1148
      %v1159 = vunpack.c.l.b16 %v1136
      %v1160 = vunpack.c.l.b16 %v1137
      %v1161 = vunpack.c.l.b16 %v1138
      %v1162 = vunpack.c.l.b16 %v1139
      %v1163 = vunpack.c.l.b16 %v1140
      %v1164 = vunpack.c.l.b16 %v1141
      %v1165 = vunpack.c.l.b16 %v1142
      %v1166 = vunpack.c.l.b16 %v1143
      %v1167 = vpack.c.b16 %v1160, %v1159
      %v1168 = vpack.c.b16 %v1162, %v1161
      %v1169 = vpack.c.b16 %v1164, %v1163
      %v1170 = vpack.c.b16 %v1166, %v1165
      %vm1175 = vcmask 523264
      %v1177 = vsel %vm1175, %v1135, 0
      %1179 = vmatprep.subr.bf16.mxu0 0
      %1180 = vmatpush1.bf16.msra.mxu0 %v1167
      %1181 = vmatprep.subr.bf16.mxu0 0
      %1182 = vmatpush1.bf16.msra.mxu0 %v1168
      %1183 = vmatprep.subr.bf16.mxu0 0
      %1184 = vmatpush1.bf16.msra.mxu0 %v1169
      %1185 = vmatprep.subr.bf16.mxu0 0
      %1186 = vmatpush1.bf16.msra.mxu0 %v1170
      %1187 = vmatprep.subr.bf16.mxu0 0
      %1188 = vmatpush1.bf16.msra.mxu0 0
      %1189 = vmatprep.subr.bf16.mxu0 0
      %1190 = vmatpush1.bf16.msra.mxu0 0
      %1191 = vmatprep.subr.bf16.mxu0 0
      %1192 = vmatpush1.bf16.msra.mxu0 0
      %1193 = vmatprep.subr.bf16.mxu0 0
      %1194 = vmatpush1.bf16.msra.mxu0 0
      %1195 = vmatprep.subr.bf16.mxu0 0
      %1196 = vmatpush1.bf16.msra.mxu0 0
      %1197 = vmatprep.subr.bf16.mxu0 0
      %1198 = vmatpush1.bf16.msra.mxu0 0
      %1199 = vmatprep.subr.bf16.mxu0 0
      %1200 = vmatpush1.bf16.msra.mxu0 0
      %1201 = vmatprep.subr.bf16.mxu0 0
      %1202 = vmatpush1.bf16.msra.mxu0 0
      %1203 = vmatprep.subr.bf16.mxu0 0
      %1204 = vmatpush1.bf16.msra.mxu0 0
      %1205 = vmatprep.subr.bf16.mxu0 0
      %1206 = vmatpush1.bf16.msra.mxu0 0
      %1207 = vmatprep.subr.bf16.mxu0 0
      %1208 = vmatpush1.bf16.msra.mxu0 0
      %1209 = vmatprep.subr.bf16.mxu0 0
      %1210 = vmatpush1.bf16.msra.mxu0 0
      %1211 = vmatprep.mubr.bf16.mxu0 0
      %1212 = vmatmul.mubr.bf16.gmra.mrb[0].mxu0 %v1177
      %v1213 = vpop.f32.mrb[0].mxu0
      %v1214 = vadd.f32 %v1149, %v1213
      %v1215 = vpop.f32.mrb[0].mxu0
      %v1216 = vpop.f32.mrb[0].mxu0
      %v1217 = vpop.f32.mrb[0].mxu0
      %1218 = vdwg.mxu0
      %v1219 = vadd.f32 %v1066, %v1214
      %v1220 = vld [vmem:[%s11] sm:$0x1]
      %v1221 = vld [vmem:[%s12] sm:$0x1]
      %v1222 = vsel %vm462, %v1219, 0.0
      %1223 = vadd.xlane.f32.xlu0 %v1222
      %v1224 = vpop.xlane.xlu0 %1223
      %v1225 = vmul.f32 %v1224, %v1042
      %v1226 = vsub.f32 %v1219, %v1225
      %v1227 = vmul.f32 %v1226, %v1226
      %v1228 = vsel %vm462, %v1227, 0.0
      %1229 = vadd.xlane.f32.xlu0 %v1228
      %v1230 = vpop.xlane.xlu0 %1229
      %v1231 = vmul.f32 %v1230, %v1042
      %v1232 = vadd.f32 %v1231, 1e-05
      %v1233 = vrsqrt.pop %v1232
      %v1234 = vmul.f32 %v1226, %v1233
      %v1236 = vlaneseq
      %v1237 = vshrl.u32 %v1236, 7
      %v1238 = vsub.s32 0, %v1237
      %v1239 = vrot.slane %v1220, %v1238
      %v1241 = vmul.f32 %v1234, %v1239
      %v1243 = vlaneseq
      %v1244 = vshrl.u32 %v1243, 7
      %v1245 = vsub.s32 0, %v1244
      %v1246 = vrot.slane %v1221, %v1245
      %v1248 = vadd.f32 %v1241, %v1246
      %v1249 = vpack.c.bf16 %v1248, %v1248
      %vm1250 = vcmask 257024
      %1251 = vst.msk [vmem:[%s435] sm:$0xf] %vm1250, %v1249
      %p1252 = scmp.lt.s32.totalorder %s24, 1
      %s1253 = scalar_select %p1252, %s24, 1
      %s1254 = smul.addr %s1253, 4
      %s1255 = scalar_lea.vmem %s13, %s1254
      // Predicated region
      $region73: #{my_model_forward.3} parent=71 // pred_check
        %p1256 = pneg %p320
      $region74: #{my_model_forward.3} parent=71 // pred_check_branch
        %1258 = sbr.rel (%p1256) target = $region76
      $region75: #{my_model_forward.3} parent=71 // pred_region
        _
      $region76: #{my_model_forward.3} parent=71 // pred_fallthru
        _
    $region72: #{my_model_forward.3} parent=5 // pred_fallthru
      _
    %p1259 = scmp.le.s32.totalorder 2, %s19
    // Predicated region
    $region77: #{my_model_forward.3} parent=5 // pred_check
      %p1260 = pneg %p1259
    $region78: #{my_model_forward.3} parent=5 // pred_check_branch
      %1262 = sbr.rel (%p1260) target = $region80
    $region79: #{my_model_forward.3} parent=5 // pred_region
      %s1263 = ssub.s32 %s19, 2
      // Predicated region
      $region81: #{my_model_forward.3} parent=79 // pred_check
        %p1264 = pneg %p326
      $region82: #{my_model_forward.3} parent=79 // pred_check_branch
        %1266 = sbr.rel (%p1264) target = $region84
      $region83: #{my_model_forward.3} parent=79 // pred_region
        %p1267 = scmp.lt.s32.totalorder %s25, 1
        %s1268 = scalar_select %p1267, %s25, 1
        %s1269 = smul.addr %s1268, 4
        %s1270 = scalar_lea.vmem %s13, %s1269
      $region84: #{my_model_forward.3} parent=79 // pred_fallthru
        _
    $region80: #{my_model_forward.3} parent=5 // pred_fallthru
      _
  $region6: #{my_model_forward.3} parent=0 // loop_footer
    %s23 = sadd.s32 1, %s19
  $region7: #{my_model_forward.3} parent=0 // loop_footer_branch
    %18 = sbr.rel target = $region3
  $region8: #{my_model_forward.3} parent=0 // loop_exit
    _

</llo_original>
